<compile_context>
chip_gen: v7x
topology: tpu7x:2x2x1
jax: 0.10.0
libtpu: 0.0.40
codegen_flags: <defaults>
</compile_context>

<pallas_src>
import functools
import math

import jax
import jax.numpy as jnp
from jax.experimental import pallas as pl
from jax.experimental.pallas import tpu as pltpu

NEG_SLOPE = 0.2


# ----------------------------------------------------------------------------
# Tiling helpers
# ----------------------------------------------------------------------------
def _round_up(x, m):
    return ((x + m - 1) // m) * m


def _pick_tile(dim, pref, align):
    """Choose (tile, padded_extent) for one matmul dimension."""
    tile = pref if dim >= pref else _round_up(dim, align)
    return tile, _round_up(dim, tile)


def _mxu_tile_pref():
    # v5e MXU is 128x128; v6e / v7x are 256x256.
    try:
        kind = jax.devices()[0].device_kind.lower()
    except Exception:
        kind = ""
    return 128 if "v5" in kind else 256


# ----------------------------------------------------------------------------
# Tiled matmul kernel:  out = act(x @ w + b)
# ----------------------------------------------------------------------------
def _matmul_bias_act_kernel(x_ref, w_ref, b_ref, o_ref, acc_ref, *,
                            negative_slope, apply_act):
    k = pl.program_id(2)

    @pl.when(k == 0)
    def _init():
        acc_ref[...] = jnp.zeros_like(acc_ref)

    acc_ref[...] += jnp.dot(x_ref[...], w_ref[...],
                            preferred_element_type=jnp.float32)

    @pl.when(k == pl.num_programs(2) - 1)
    def _finish():
        r = acc_ref[...] + b_ref[...]          # (1, tn) broadcasts over rows
        if apply_act:
            r = jnp.where(r >= 0.0, r, negative_slope * r)
        o_ref[...] = r.astype(o_ref.dtype)


def matmul_bias_act(x, w, b, *, apply_act, negative_slope=NEG_SLOPE):
    """x:(M,K) f32, w:(K,N) f32, b:(N,) f32 -> act(x @ w + b) : (M,N) f32."""
    M, K = x.shape
    K2, N = w.shape
    assert K == K2 and b.shape == (N,)

    pref = _mxu_tile_pref()
    tm, Mp = _pick_tile(M, 2 * pref, 8)
    tn, Np = _pick_tile(N, pref, 128)
    tk, Kp = _pick_tile(K, 2 * pref, 128)

    # bf16 operands for the MXU, zero-padded to lane-dense tile multiples.
    xp = jnp.pad(x, ((0, Mp - M), (0, Kp - K))).astype(jnp.bfloat16)
    wp = jnp.pad(w, ((0, Kp - K), (0, Np - N))).astype(jnp.bfloat16)
    bp = jnp.pad(b, (0, Np - N)).astype(jnp.float32).reshape(1, Np)

    kernel = functools.partial(_matmul_bias_act_kernel,
                               negative_slope=negative_slope,
                               apply_act=apply_act)
    out = pl.pallas_call(
        kernel,
        out_shape=jax.ShapeDtypeStruct((Mp, Np), jnp.float32),
        grid_spec=pltpu.PrefetchScalarGridSpec(
            num_scalar_prefetch=0,
            grid=(Mp // tm, Np // tn, Kp // tk),
            in_specs=[
                pl.BlockSpec((tm, tk), lambda i, j, k: (i, k)),
                pl.BlockSpec((tk, tn), lambda i, j, k: (k, j)),
                pl.BlockSpec((1, tn), lambda i, j, k: (0, j)),
            ],
            out_specs=pl.BlockSpec((tm, tn), lambda i, j, k: (i, j)),
            scratch_shapes=[pltpu.VMEM((tm, tn), jnp.float32)],
        ),
        compiler_params=pltpu.CompilerParams(
            dimension_semantics=("parallel", "parallel", "arbitrary")),
    )(xp, wp, bp)
    return out[:M, :N]


# ----------------------------------------------------------------------------
# Fused head kernel: 4x4 valid conv -> LeakyReLU -> Linear(hidden, 1)
# ----------------------------------------------------------------------------
def _head_kernel(x_ref, wc_ref, bc_ref, wl_ref, bl_ref, o_ref, *,
                 negative_slope):
    h = jnp.dot(x_ref[...], wc_ref[...], preferred_element_type=jnp.float32)
    h = h + bc_ref[...]
    h = jnp.where(h >= 0.0, h, negative_slope * h)
    o = jnp.dot(h.astype(wl_ref.dtype), wl_ref[...],
                preferred_element_type=jnp.float32)
    o_ref[...] = (o + bl_ref[...]).astype(o_ref.dtype)


def head_forward(a_nhwc, w_conv, b_conv, w_lin, b_lin, *,
                 negative_slope=NEG_SLOPE):
    n, hh, ww, c = a_nhwc.shape          # 4x4 conv covers the whole 4x4 map
    oc = w_conv.shape[0]
    k1 = hh * ww * c
    conv_scale = math.sqrt(2.0 / (c * hh * ww))
    lin_scale = math.sqrt(2.0 / w_lin.shape[1])

    x2 = a_nhwc.reshape(n, k1)                                   # (kh,kw,ic)
    wc = jnp.transpose(w_conv * conv_scale, (2, 3, 1, 0)).reshape(k1, oc)
    wl = (w_lin * lin_scale).T                                   # (oc, 1)

    tm, Mp = _pick_tile(n, 128, 8)
    K1p = _round_up(k1, 128)
    Hp = _round_up(oc, 128)
    OUTP = 128                                   # lane-dense final store

    x2p = jnp.pad(x2, ((0, Mp - n), (0, K1p - k1))).astype(jnp.bfloat16)
    wcp = jnp.pad(wc, ((0, K1p - k1), (0, Hp - oc))).astype(jnp.bfloat16)
    bcp = jnp.pad(b_conv, (0, Hp - oc)).astype(jnp.float32).reshape(1, Hp)
    wlp = jnp.pad(wl, ((0, Hp - oc), (0, OUTP - wl.shape[1]))
                  ).astype(jnp.bfloat16)
    blp = jnp.pad(b_lin.reshape(1, -1),
                  ((0, 0), (0, OUTP - b_lin.shape[0]))).astype(jnp.float32)

    kernel = functools.partial(_head_kernel, negative_slope=negative_slope)
    out = pl.pallas_call(
        kernel,
        out_shape=jax.ShapeDtypeStruct((Mp, OUTP), jnp.float32),
        grid_spec=pltpu.PrefetchScalarGridSpec(
            num_scalar_prefetch=0,
            grid=(Mp // tm,),
            in_specs=[
                pl.BlockSpec((tm, K1p), lambda i: (i, 0)),
                pl.BlockSpec((K1p, Hp), lambda i: (0, 0)),
                pl.BlockSpec((1, Hp), lambda i: (0, 0)),
                pl.BlockSpec((Hp, OUTP), lambda i: (0, 0)),
                pl.BlockSpec((1, OUTP), lambda i: (0, 0)),
            ],
            out_specs=pl.BlockSpec((tm, OUTP), lambda i: (i, 0)),
        ),
        compiler_params=pltpu.CompilerParams(
            dimension_semantics=("parallel",)),
    )(x2p, wcp, bcp, wlp, blp)
    return out[:n, :1]


# ----------------------------------------------------------------------------
# Plain-JAX glue: im2col (tiny at 4x4 base resolution) and MiniBatchStd
# ----------------------------------------------------------------------------
def _im2col(x, kh, kw, stride, padding):
    n, h, w, c = x.shape
    xp = jnp.pad(x, ((0, 0), (padding, padding), (padding, padding), (0, 0)))
    oh = (h + 2 * padding - kh) // stride + 1
    ow = (w + 2 * padding - kw) // stride + 1
    cols = []
    for i in range(kh):
        for j in range(kw):
            cols.append(xp[:, i:i + stride * (oh - 1) + 1:stride,
                           j:j + stride * (ow - 1) + 1:stride, :])
    patches = jnp.concatenate(cols, axis=-1)       # (n, oh, ow, kh*kw*c)
    return patches.reshape(n * oh * ow, kh * kw * c), oh, ow


def conv2d_equalized(x_nhwc, w_oihw, b, *, stride, padding, apply_act):
    oc, ic, kh, kw = w_oihw.shape
    scale = math.sqrt(2.0 / (ic * kh * kw))        # equalized-LR He scale
    patches, oh, ow = _im2col(x_nhwc, kh, kw, stride, padding)
    w_mat = jnp.transpose(w_oihw * scale, (2, 3, 1, 0)).reshape(kh * kw * ic, oc)
    out = matmul_bias_act(patches, w_mat, b, apply_act=apply_act)
    return out.reshape(x_nhwc.shape[0], oh, ow, oc)


def minibatch_std(x_nhwc):
    std = jnp.std(x_nhwc, axis=0, ddof=1)          # unbiased, like torch.std
    mean_std = jnp.mean(std)
    feat = jnp.full(x_nhwc.shape[:3] + (1,), mean_std, x_nhwc.dtype)
    return jnp.concatenate([x_nhwc, feat], axis=-1)


# ----------------------------------------------------------------------------
# PGDiscriminator forward (alpha >= 1.0, no pending next block)
# ----------------------------------------------------------------------------
def pg_discriminator_forward(params, x_nchw):
    # TODO(synk): fade_in_layer / create_next_block / add_next_block
    # (progressive-growing state machinery, only reachable with alpha < 1.0 or
    # block_ready == 1) are not implemented; only the default forward path is.
    x = jnp.transpose(x_nchw, (0, 2, 3, 1))                     # NCHW -> NHWC
    h = conv2d_equalized(x, *params["fromRGB"], stride=1, padding=0,
                         apply_act=False)                       # fromRGB
    h = minibatch_std(h)
    h = conv2d_equalized(h, *params["conv3"], stride=1, padding=1,
                         apply_act=True)
    out = head_forward(h, *params["conv4"], *params["toOut"])   # fused head
    return out                                                  # (N, 1)


# ----------------------------------------------------------------------------
# Parameter init (ProGAN equalized-LR: w ~ N(0,1), bias = 0)
# ----------------------------------------------------------------------------
def init_params(key, input_size, hidden_size):
    ks = jax.random.split(key, 4)

    def conv(k, oc, ic, kh, kw):
        return (jax.random.normal(k, (oc, ic, kh, kw), jnp.float32),
                jnp.zeros((oc,), jnp.float32))

    return {
        "fromRGB": conv(ks[0], hidden_size, input_size, 1, 1),
        "conv3": conv(ks[1], hidden_size, hidden_size + 1, 3, 3),
        "conv4": conv(ks[2], hidden_size, hidden_size, 4, 4),
        "toOut": (jax.random.normal(ks[3], (1, hidden_size), jnp.float32),
                  jnp.zeros((1,), jnp.float32)),
    }


# ----------------------------------------------------------------------------
# Pure-JAX reference (f32, lax.conv) for numerical verification
# ----------------------------------------------------------------------------
def reference_forward(params, x_nchw):
    def lrelu(v):
        return jnp.where(v >= 0.0, v, NEG_SLOPE * v)

    def conv(x, w, b, stride, padding):
        scale = math.sqrt(2.0 / (w.shape[1] * w.shape[2] * w.shape[3]))
        out = jax.lax.conv_general_dilated(
            x, w * scale, (stride, stride),
            [(padding, padding), (padding, padding)],
            dimension_numbers=("NCHW", "OIHW", "NCHW"))
        return out + b.reshape(1, -1, 1, 1)

    h = conv(x_nchw, *params["fromRGB"], 1, 0)
    std = jnp.std(h, axis=0, ddof=1)
    feat = jnp.full((h.shape[0], 1, h.shape[2], h.shape[3]), jnp.mean(std),
                    h.dtype)
    h = jnp.concatenate([h, feat], axis=1)
    h = lrelu(conv(h, *params["conv3"], 1, 1))
    h = lrelu(conv(h, *params["conv4"], 1, 0))
    h = h.reshape(h.shape[0], -1)
    w_lin, b_lin = params["toOut"]
    lin_scale = math.sqrt(2.0 / w_lin.shape[1])
    return h @ (w_lin * lin_scale).T + b_lin


if __name__ == "__main__":
    batch = 4
    input_size = 3       # RGB
    hidden_size = 32
    spatial = 4          # base PG-GAN block: 4x4 -> (4x4 valid conv) -> 1x1

    key = jax.random.PRNGKey(0)
    kx, kp = jax.random.split(key)
    x = jax.random.normal(kx, (batch, input_size, spatial, spatial),
                          jnp.float32)
    params = init_params(kp, input_size, hidden_size)

    fwd = jax.jit(pg_discriminator_forward)
    out = jax.block_until_ready(fwd(params, x))
    assert out.shape == (batch, 1), out.shape

    ref = jax.block_until_ready(reference_forward(params, x))
    if not jnp.allclose(out, ref, atol=5e-2, rtol=5e-2):
        err = float(jnp.max(jnp.abs(out - ref)))
        raise AssertionError(
            f"Pallas output mismatches reference (max abs err {err})")

    print("KERNEL_OK")
</pallas_src>

<mosaic_0001>
module attributes {stable_mosaic.version = 11 : i64} {
  func.func @_matmul_bias_act_kernel(%arg0: i32, %arg1: i32, %arg2: i32, %arg3: memref<64x128xbf16, #tpu.memory_space<vmem>>, %arg4: memref<128x128xbf16, #tpu.memory_space<vmem>>, %arg5: memref<1x128xf32, #tpu.memory_space<vmem>>, %arg6: memref<64x128xf32, #tpu.memory_space<vmem>>, %arg7: memref<64x128xf32, #tpu.memory_space<vmem>>) attributes {dimension_semantics = [#tpu.dimension_semantics<parallel>, #tpu.dimension_semantics<parallel>, #tpu.dimension_semantics<arbitrary>], iteration_bounds = array<i64: 1, 1, 1>, scalar_prefetch = 0 : i64, scratch_operands = 1 : i64, tpu.core_type = #tpu.core_type<tc>, window_params = [{transform_indices = @transform_0, window_bounds = array<i64: 64, 128>}, {transform_indices = @transform_1, window_bounds = array<i64: 128, 128>}, {transform_indices = @transform_2, window_bounds = array<i64: 1, 128>}, {transform_indices = @transform_3, window_bounds = array<i64: 64, 128>}]} {
    %c0_i32 = arith.constant 0 : i32
    %0 = arith.cmpi eq, %arg2, %c0_i32 : i32
    %1 = arith.extui %0 : i1 to i32
    %c0_i32_0 = arith.constant 0 : i32
    %2 = arith.cmpi ne, %1, %c0_i32_0 : i32
    scf.if %2 {
      %cst_10 = arith.constant 0.000000e+00 : f32
      %12 = vector.broadcast %cst_10 : f32 to vector<64x128xf32>
      %c0_11 = arith.constant 0 : index
      %c0_12 = arith.constant 0 : index
      %13 = vector.load %arg7[%c0_11, %c0_12] : memref<64x128xf32, #tpu.memory_space<vmem>>, vector<64x128xf32>
      tpu.vector_store %arg7[%c0_11, %c0_12], %12 {strides = array<i32>} : memref<64x128xf32, #tpu.memory_space<vmem>>, vector<64x128xf32>,
    } else {
    }
    %c0 = arith.constant 0 : index
    %c0_1 = arith.constant 0 : index
    %3 = vector.load %arg7[%c0, %c0_1] : memref<64x128xf32, #tpu.memory_space<vmem>>, vector<64x128xf32>
    %c0_2 = arith.constant 0 : index
    %c0_3 = arith.constant 0 : index
    %4 = vector.load %arg3[%c0_2, %c0_3] : memref<64x128xbf16, #tpu.memory_space<vmem>>, vector<64x128xbf16>
    %c0_4 = arith.constant 0 : index
    %c0_5 = arith.constant 0 : index
    %5 = vector.load %arg4[%c0_4, %c0_5] : memref<128x128xbf16, #tpu.memory_space<vmem>>, vector<128x128xbf16>
    %cst = arith.constant dense<0.000000e+00> : vector<64x128xf32>
    %6 = tpu.matmul %4, %5, %cst {dimension_numbers = #tpu.dot_dimension_numbers<[1], [0], [0], [1], [0, 0, 1, 1], [], []>} : vector<64x128xbf16>, vector<128x128xbf16>, vector<64x128xf32> -> vector<64x128xf32>
    %7 = arith.addf %3, %6 : vector<64x128xf32>
    %c0_6 = arith.constant 0 : index
    %c0_7 = arith.constant 0 : index
    %8 = vector.load %arg7[%c0_6, %c0_7] : memref<64x128xf32, #tpu.memory_space<vmem>>, vector<64x128xf32>
    tpu.vector_store %arg7[%c0_6, %c0_7], %7 {strides = array<i32>} : memref<64x128xf32, #tpu.memory_space<vmem>>, vector<64x128xf32>,
    %c0_i32_8 = arith.constant 0 : i32
    %9 = arith.cmpi eq, %arg2, %c0_i32_8 : i32
    %10 = arith.extui %9 : i1 to i32
    %c0_i32_9 = arith.constant 0 : i32
    %11 = arith.cmpi ne, %10, %c0_i32_9 : i32
    scf.if %11 {
      %c0_10 = arith.constant 0 : index
      %c0_11 = arith.constant 0 : index
      %12 = vector.load %arg7[%c0_10, %c0_11] : memref<64x128xf32, #tpu.memory_space<vmem>>, vector<64x128xf32>
      %c0_12 = arith.constant 0 : index
      %c0_13 = arith.constant 0 : index
      %13 = vector.load %arg5[%c0_12, %c0_13] : memref<1x128xf32, #tpu.memory_space<vmem>>, vector<1x128xf32>
      %14 = vector.broadcast %13 : vector<1x128xf32> to vector<64x128xf32>
      %15 = arith.addf %12, %14 : vector<64x128xf32>
      %c0_14 = arith.constant 0 : index
      %c0_15 = arith.constant 0 : index
      %16 = vector.load %arg6[%c0_14, %c0_15] : memref<64x128xf32, #tpu.memory_space<vmem>>, vector<64x128xf32>
      tpu.vector_store %arg6[%c0_14, %c0_15], %15 {strides = array<i32>} : memref<64x128xf32, #tpu.memory_space<vmem>>, vector<64x128xf32>,
    } else {
    }
    return
  }
  func.func @transform_0(%arg0: i32, %arg1: i32, %arg2: i32) -> (i32, i32) {
    %c0_i32 = arith.constant 0 : i32
    return %arg0, %arg2 : i32, i32
  }
  func.func @transform_1(%arg0: i32, %arg1: i32, %arg2: i32) -> (i32, i32) {
    %c0_i32 = arith.constant 0 : i32
    return %arg2, %arg1 : i32, i32
  }
  func.func @transform_2(%arg0: i32, %arg1: i32, %arg2: i32) -> (i32, i32) {
    %c0_i32 = arith.constant 0 : i32
    %c0_i32_0 = arith.constant 0 : i32
    return %c0_i32, %arg1 : i32, i32
  }
  func.func @transform_3(%arg0: i32, %arg1: i32, %arg2: i32) -> (i32, i32) {
    %c0_i32 = arith.constant 0 : i32
    return %arg0, %arg1 : i32, i32
  }
}

module attributes {stable_mosaic.version = 11 : i64} {
  func.func @_matmul_bias_act_kernel(%arg0: i32, %arg1: i32, %arg2: i32, %arg3: memref<64x384xbf16, #tpu.memory_space<vmem>>, %arg4: memref<384x128xbf16, #tpu.memory_space<vmem>>, %arg5: memref<1x128xf32, #tpu.memory_space<vmem>>, %arg6: memref<64x128xf32, #tpu.memory_space<vmem>>, %arg7: memref<64x128xf32, #tpu.memory_space<vmem>>) attributes {dimension_semantics = [#tpu.dimension_semantics<parallel>, #tpu.dimension_semantics<parallel>, #tpu.dimension_semantics<arbitrary>], iteration_bounds = array<i64: 1, 1, 1>, scalar_prefetch = 0 : i64, scratch_operands = 1 : i64, tpu.core_type = #tpu.core_type<tc>, window_params = [{transform_indices = @transform_0, window_bounds = array<i64: 64, 384>}, {transform_indices = @transform_1, window_bounds = array<i64: 384, 128>}, {transform_indices = @transform_2, window_bounds = array<i64: 1, 128>}, {transform_indices = @transform_3, window_bounds = array<i64: 64, 128>}]} {
    %c0_i32 = arith.constant 0 : i32
    %0 = arith.cmpi eq, %arg2, %c0_i32 : i32
    %1 = arith.extui %0 : i1 to i32
    %c0_i32_0 = arith.constant 0 : i32
    %2 = arith.cmpi ne, %1, %c0_i32_0 : i32
    scf.if %2 {
      %cst_10 = arith.constant 0.000000e+00 : f32
      %12 = vector.broadcast %cst_10 : f32 to vector<64x128xf32>
      %c0_11 = arith.constant 0 : index
      %c0_12 = arith.constant 0 : index
      %13 = vector.load %arg7[%c0_11, %c0_12] : memref<64x128xf32, #tpu.memory_space<vmem>>, vector<64x128xf32>
      tpu.vector_store %arg7[%c0_11, %c0_12], %12 {strides = array<i32>} : memref<64x128xf32, #tpu.memory_space<vmem>>, vector<64x128xf32>,
    } else {
    }
    %c0 = arith.constant 0 : index
    %c0_1 = arith.constant 0 : index
    %3 = vector.load %arg7[%c0, %c0_1] : memref<64x128xf32, #tpu.memory_space<vmem>>, vector<64x128xf32>
    %c0_2 = arith.constant 0 : index
    %c0_3 = arith.constant 0 : index
    %4 = vector.load %arg3[%c0_2, %c0_3] : memref<64x384xbf16, #tpu.memory_space<vmem>>, vector<64x384xbf16>
    %c0_4 = arith.constant 0 : index
    %c0_5 = arith.constant 0 : index
    %5 = vector.load %arg4[%c0_4, %c0_5] : memref<384x128xbf16, #tpu.memory_space<vmem>>, vector<384x128xbf16>
    %cst = arith.constant dense<0.000000e+00> : vector<64x128xf32>
    %6 = tpu.matmul %4, %5, %cst {dimension_numbers = #tpu.dot_dimension_numbers<[1], [0], [0], [1], [0, 0, 1, 1], [], []>} : vector<64x384xbf16>, vector<384x128xbf16>, vector<64x128xf32> -> vector<64x128xf32>
    %7 = arith.addf %3, %6 : vector<64x128xf32>
    %c0_6 = arith.constant 0 : index
    %c0_7 = arith.constant 0 : index
    %8 = vector.load %arg7[%c0_6, %c0_7] : memref<64x128xf32, #tpu.memory_space<vmem>>, vector<64x128xf32>
    tpu.vector_store %arg7[%c0_6, %c0_7], %7 {strides = array<i32>} : memref<64x128xf32, #tpu.memory_space<vmem>>, vector<64x128xf32>,
    %c0_i32_8 = arith.constant 0 : i32
    %9 = arith.cmpi eq, %arg2, %c0_i32_8 : i32
    %10 = arith.extui %9 : i1 to i32
    %c0_i32_9 = arith.constant 0 : i32
    %11 = arith.cmpi ne, %10, %c0_i32_9 : i32
    scf.if %11 {
      %c0_10 = arith.constant 0 : index
      %c0_11 = arith.constant 0 : index
      %12 = vector.load %arg7[%c0_10, %c0_11] : memref<64x128xf32, #tpu.memory_space<vmem>>, vector<64x128xf32>
      %c0_12 = arith.constant 0 : index
      %c0_13 = arith.constant 0 : index
      %13 = vector.load %arg5[%c0_12, %c0_13] : memref<1x128xf32, #tpu.memory_space<vmem>>, vector<1x128xf32>
      %14 = vector.broadcast %13 : vector<1x128xf32> to vector<64x128xf32>
      %15 = arith.addf %12, %14 : vector<64x128xf32>
      %cst_14 = arith.constant 0.000000e+00 : f32
      %16 = vector.broadcast %cst_14 : f32 to vector<64x128xf32>
      %17 = arith.cmpf oge, %15, %16 : vector<64x128xf32>
      %cst_15 = arith.constant 2.000000e-01 : f32
      %18 = vector.broadcast %cst_15 : f32 to vector<64x128xf32>
      %19 = arith.mulf %18, %15 : vector<64x128xf32>
      %20 = arith.select %17, %15, %19 : vector<64x128xi1>, vector<64x128xf32>
      %c0_16 = arith.constant 0 : index
      %c0_17 = arith.constant 0 : index
      %21 = vector.load %arg6[%c0_16, %c0_17] : memref<64x128xf32, #tpu.memory_space<vmem>>, vector<64x128xf32>
      tpu.vector_store %arg6[%c0_16, %c0_17], %20 {strides = array<i32>} : memref<64x128xf32, #tpu.memory_space<vmem>>, vector<64x128xf32>,
    } else {
    }
    return
  }
  func.func @transform_0(%arg0: i32, %arg1: i32, %arg2: i32) -> (i32, i32) {
    %c0_i32 = arith.constant 0 : i32
    return %arg0, %arg2 : i32, i32
  }
  func.func @transform_1(%arg0: i32, %arg1: i32, %arg2: i32) -> (i32, i32) {
    %c0_i32 = arith.constant 0 : i32
    return %arg2, %arg1 : i32, i32
  }
  func.func @transform_2(%arg0: i32, %arg1: i32, %arg2: i32) -> (i32, i32) {
    %c0_i32 = arith.constant 0 : i32
    %c0_i32_0 = arith.constant 0 : i32
    return %c0_i32, %arg1 : i32, i32
  }
  func.func @transform_3(%arg0: i32, %arg1: i32, %arg2: i32) -> (i32, i32) {
    %c0_i32 = arith.constant 0 : i32
    return %arg0, %arg1 : i32, i32
  }
}

module attributes {stable_mosaic.version = 11 : i64} {
  func.func @_head_kernel(%arg0: i32, %arg1: memref<8x512xbf16, #tpu.memory_space<vmem>>, %arg2: memref<512x128xbf16, #tpu.memory_space<vmem>>, %arg3: memref<1x128xf32, #tpu.memory_space<vmem>>, %arg4: memref<128x128xbf16, #tpu.memory_space<vmem>>, %arg5: memref<1x128xf32, #tpu.memory_space<vmem>>, %arg6: memref<8x128xf32, #tpu.memory_space<vmem>>) attributes {dimension_semantics = [#tpu.dimension_semantics<parallel>], iteration_bounds = array<i64: 1>, scalar_prefetch = 0 : i64, scratch_operands = 0 : i64, tpu.core_type = #tpu.core_type<tc>, window_params = [{transform_indices = @transform_0, window_bounds = array<i64: 8, 512>}, {pipeline_mode = #tpu.pipeline_mode<synchronous>, transform_indices = @transform_1, window_bounds = array<i64: 512, 128>}, {pipeline_mode = #tpu.pipeline_mode<synchronous>, transform_indices = @transform_2, window_bounds = array<i64: 1, 128>}, {pipeline_mode = #tpu.pipeline_mode<synchronous>, transform_indices = @transform_3, window_bounds = array<i64: 128, 128>}, {pipeline_mode = #tpu.pipeline_mode<synchronous>, transform_indices = @transform_4, window_bounds = array<i64: 1, 128>}, {transform_indices = @transform_5, window_bounds = array<i64: 8, 128>}]} {
    %c0 = arith.constant 0 : index
    %c0_0 = arith.constant 0 : index
    %0 = vector.load %arg1[%c0, %c0_0] : memref<8x512xbf16, #tpu.memory_space<vmem>>, vector<8x512xbf16>
    %c0_1 = arith.constant 0 : index
    %c0_2 = arith.constant 0 : index
    %1 = vector.load %arg2[%c0_1, %c0_2] : memref<512x128xbf16, #tpu.memory_space<vmem>>, vector<512x128xbf16>
    %cst = arith.constant dense<0.000000e+00> : vector<8x128xf32>
    %2 = tpu.matmul %0, %1, %cst {dimension_numbers = #tpu.dot_dimension_numbers<[1], [0], [0], [1], [0, 0, 1, 1], [], []>} : vector<8x512xbf16>, vector<512x128xbf16>, vector<8x128xf32> -> vector<8x128xf32>
    %c0_3 = arith.constant 0 : index
    %c0_4 = arith.constant 0 : index
    %3 = vector.load %arg3[%c0_3, %c0_4] : memref<1x128xf32, #tpu.memory_space<vmem>>, vector<1x128xf32>
    %4 = vector.broadcast %3 : vector<1x128xf32> to vector<8x128xf32>
    %5 = arith.addf %2, %4 : vector<8x128xf32>
    %cst_5 = arith.constant 0.000000e+00 : f32
    %6 = vector.broadcast %cst_5 : f32 to vector<8x128xf32>
    %7 = arith.cmpf oge, %5, %6 : vector<8x128xf32>
    %cst_6 = arith.constant 2.000000e-01 : f32
    %8 = vector.broadcast %cst_6 : f32 to vector<8x128xf32>
    %9 = arith.mulf %8, %5 : vector<8x128xf32>
    %10 = arith.select %7, %5, %9 : vector<8x128xi1>, vector<8x128xf32>
    %11 = arith.truncf %10 : vector<8x128xf32> to vector<8x128xbf16>
    %c0_7 = arith.constant 0 : index
    %c0_8 = arith.constant 0 : index
    %12 = vector.load %arg4[%c0_7, %c0_8] : memref<128x128xbf16, #tpu.memory_space<vmem>>, vector<128x128xbf16>
    %cst_9 = arith.constant dense<0.000000e+00> : vector<8x128xf32>
    %13 = tpu.matmul %11, %12, %cst_9 {dimension_numbers = #tpu.dot_dimension_numbers<[1], [0], [0], [1], [0, 0, 1, 1], [], []>} : vector<8x128xbf16>, vector<128x128xbf16>, vector<8x128xf32> -> vector<8x128xf32>
    %c0_10 = arith.constant 0 : index
    %c0_11 = arith.constant 0 : index
    %14 = vector.load %arg5[%c0_10, %c0_11] : memref<1x128xf32, #tpu.memory_space<vmem>>, vector<1x128xf32>
    %15 = vector.broadcast %14 : vector<1x128xf32> to vector<8x128xf32>
    %16 = arith.addf %13, %15 : vector<8x128xf32>
    %c0_12 = arith.constant 0 : index
    %c0_13 = arith.constant 0 : index
    %17 = vector.load %arg6[%c0_12, %c0_13] : memref<8x128xf32, #tpu.memory_space<vmem>>, vector<8x128xf32>
    tpu.vector_store %arg6[%c0_12, %c0_13], %16 {strides = array<i32>} : memref<8x128xf32, #tpu.memory_space<vmem>>, vector<8x128xf32>,
    return
  }
  func.func @transform_0(%arg0: i32) -> (i32, i32) {
    %c0_i32 = arith.constant 0 : i32
    %c0_i32_0 = arith.constant 0 : i32
    return %arg0, %c0_i32 : i32, i32
  }
  func.func @transform_1(%arg0: i32) -> (i32, i32) {
    %c0_i32 = arith.constant 0 : i32
    %c0_i32_0 = arith.constant 0 : i32
    %c0_i32_1 = arith.constant 0 : i32
    return %c0_i32, %c0_i32_0 : i32, i32
  }
  func.func @transform_2(%arg0: i32) -> (i32, i32) {
    %c0_i32 = arith.constant 0 : i32
    %c0_i32_0 = arith.constant 0 : i32
    %c0_i32_1 = arith.constant 0 : i32
    return %c0_i32, %c0_i32_0 : i32, i32
  }
  func.func @transform_3(%arg0: i32) -> (i32, i32) {
    %c0_i32 = arith.constant 0 : i32
    %c0_i32_0 = arith.constant 0 : i32
    %c0_i32_1 = arith.constant 0 : i32
    return %c0_i32, %c0_i32_0 : i32, i32
  }
  func.func @transform_4(%arg0: i32) -> (i32, i32) {
    %c0_i32 = arith.constant 0 : i32
    %c0_i32_0 = arith.constant 0 : i32
    %c0_i32_1 = arith.constant 0 : i32
    return %c0_i32, %c0_i32_0 : i32, i32
  }
  func.func @transform_5(%arg0: i32) -> (i32, i32) {
    %c0_i32 = arith.constant 0 : i32
    %c0_i32_0 = arith.constant 0 : i32
    return %arg0, %c0_i32 : i32, i32
  }
}

</mosaic_0001>

<llo_original>
// kernel: pg_discriminator_forward.3
$region0: #{pg_discriminator_forward.3}
  #allocation0 [shape = 'u32[]', space=smem, size = 0x4, offset = 0x4, fixed_abs, tag = 'smem constant byte address 0x4 - core index']
  #allocation1 [shape = 'u32[144,128]{1,0:T(1,128)}', space=vmem, size = 0x12000, scoped, tag = 'internal scratch']
  #allocation2 [shape = 'f32[64,128]{1,0:T(8,128)}', space=vmem, size = 0x8000, scoped, tag = 'scratch operand']
  %s0 = inlined_call_operand.vmem [shape: bf16[64,128], index: 0, kind: input, shape index: {}]
  %s1 = inlined_call_operand.vmem [shape: bf16[128,128], index: 1, kind: input, shape index: {}]
  %s2 = inlined_call_operand.vmem [shape: f32[1,128], index: 2, kind: input, shape index: {}]
  %s3 = inlined_call_operand.vmem [shape: f32[64,128], index: 3, kind: output, shape index: {}]
  %s4 = sld [smem:[#allocation0]]
  $region30: #{pg_discriminator_forward.3} parent=0
    _
  %s6 = ssub.s32 1, %s4
  %s7 = scalar_select 0, %s6, %s4
  // Predicated region
  $region2: #{pg_discriminator_forward.3} parent=0 // pred_check
    _
  $region3: #{pg_discriminator_forward.3} parent=0 // pred_check_branch
    %9 = sbr.rel (0) target = $region5
  $region4: #{pg_discriminator_forward.3} parent=0 // pred_region
    _
  $region5: #{pg_discriminator_forward.3} parent=0 // pred_fallthru
    _
  // Predicated region
  $region6: #{pg_discriminator_forward.3} parent=0 // pred_check
    _
  $region7: #{pg_discriminator_forward.3} parent=0 // pred_check_branch
    %11 = sbr.rel (0) target = $region9
  $region8: #{pg_discriminator_forward.3} parent=0 // pred_region
    _
  $region9: #{pg_discriminator_forward.3} parent=0 // pred_fallthru
    _
  // Predicated region
  $region10: #{pg_discriminator_forward.3} parent=0 // pred_check
    _
  $region11: #{pg_discriminator_forward.3} parent=0 // pred_check_branch
    %13 = sbr.rel (0) target = $region13
  $region12: #{pg_discriminator_forward.3} parent=0 // pred_region
    _
  $region13: #{pg_discriminator_forward.3} parent=0 // pred_fallthru
    _
  %p15 = scmp.eq.s32.totalorder 0, 0
  // Predicated region
  $region14: #{pg_discriminator_forward.3} parent=0 // pred_check
    %p16 = pneg %p15
  $region15: #{pg_discriminator_forward.3} parent=0 // pred_check_branch
    %18 = sbr.rel (%p16) target = $region17
  $region16: #{pg_discriminator_forward.3} parent=0 // pred_region
    %19 = vst [vmem:[#allocation2] sm:$0xff] 0.0
    %20 = vst [vmem:[#allocation2 + $0x8] sm:$0xff] 0.0
    %21 = vst [vmem:[#allocation2 + $0x10] sm:$0xff] 0.0
    %22 = vst [vmem:[#allocation2 + $0x18] sm:$0xff] 0.0
    %23 = vst [vmem:[#allocation2 + $0x20] sm:$0xff] 0.0
    %24 = vst [vmem:[#allocation2 + $0x28] sm:$0xff] 0.0
    %25 = vst [vmem:[#allocation2 + $0x30] sm:$0xff] 0.0
    %26 = vst [vmem:[#allocation2 + $0x38] sm:$0xff] 0.0
  $region17: #{pg_discriminator_forward.3} parent=0 // pred_fallthru
    _
  %v27 = vld [vmem:[#allocation2] sm:$0xff]
  %v28 = vld [vmem:[#allocation2 + $0x8] sm:$0xff]
  %v29 = vld [vmem:[#allocation2 + $0x10] sm:$0xff]
  %v30 = vld [vmem:[#allocation2 + $0x18] sm:$0xff]
  %v31 = vld [vmem:[#allocation2 + $0x20] sm:$0xff]
  %v32 = vld [vmem:[#allocation2 + $0x28] sm:$0xff]
  %v33 = vld [vmem:[#allocation2 + $0x30] sm:$0xff]
  %v34 = vld [vmem:[#allocation2 + $0x38] sm:$0xff]
  %v35 = vld [vmem:[%s0] sm:$0xf]
  %v36 = vld [vmem:[%s0 + $0x4] sm:$0xf]
  %v37 = vld [vmem:[%s0 + $0x8] sm:$0xf]
  %v38 = vld [vmem:[%s0 + $0xc] sm:$0xf]
  %v39 = vld [vmem:[%s0 + $0x10] sm:$0xf]
  %v40 = vld [vmem:[%s0 + $0x14] sm:$0xf]
  %v41 = vld [vmem:[%s0 + $0x18] sm:$0xf]
  %v42 = vld [vmem:[%s0 + $0x1c] sm:$0xf]
  %v43 = vld [vmem:[%s1] sm:$0xf]
  %v44 = vld [vmem:[%s1 + $0x4] sm:$0xf]
  %v45 = vld [vmem:[%s1 + $0x8] sm:$0xf]
  %v46 = vld [vmem:[%s1 + $0xc] sm:$0xf]
  %v47 = vld [vmem:[%s1 + $0x10] sm:$0xf]
  %v48 = vld [vmem:[%s1 + $0x14] sm:$0xf]
  %v49 = vld [vmem:[%s1 + $0x18] sm:$0xf]
  %v50 = vld [vmem:[%s1 + $0x1c] sm:$0xf]
  %v51 = vld [vmem:[%s1 + $0x20] sm:$0xf]
  %v52 = vld [vmem:[%s1 + $0x24] sm:$0xf]
  %v53 = vld [vmem:[%s1 + $0x28] sm:$0xf]
  %v54 = vld [vmem:[%s1 + $0x2c] sm:$0xf]
  %v55 = vld [vmem:[%s1 + $0x30] sm:$0xf]
  %v56 = vld [vmem:[%s1 + $0x34] sm:$0xf]
  %v57 = vld [vmem:[%s1 + $0x38] sm:$0xf]
  %v58 = vld [vmem:[%s1 + $0x3c] sm:$0xf]
  %v67 = vunpack.c.l.b16 %v35
  %v68 = vunpack.c.l.b16 %v36
  %v69 = vunpack.c.l.b16 %v37
  %v70 = vunpack.c.l.b16 %v38
  %v71 = vunpack.c.l.b16 %v39
  %v72 = vunpack.c.l.b16 %v40
  %v73 = vunpack.c.l.b16 %v41
  %v74 = vunpack.c.l.b16 %v42
  %v75 = vpack.c.b16 %v68, %v67
  %v76 = vpack.c.b16 %v70, %v69
  %v77 = vpack.c.b16 %v72, %v71
  %v78 = vpack.c.b16 %v74, %v73
  %v99 = vunpack.c.l.b16 %v43
  %v100 = vunpack.c.l.b16 %v44
  %v101 = vunpack.c.l.b16 %v45
  %v102 = vunpack.c.l.b16 %v46
  %v103 = vunpack.c.l.b16 %v47
  %v104 = vunpack.c.l.b16 %v48
  %v105 = vunpack.c.l.b16 %v49
  %v106 = vunpack.c.l.b16 %v50
  %v107 = vunpack.c.l.b16 %v51
  %v108 = vunpack.c.l.b16 %v52
  %v109 = vunpack.c.l.b16 %v53
  %v110 = vunpack.c.l.b16 %v54
  %v111 = vunpack.c.l.b16 %v55
  %v112 = vunpack.c.l.b16 %v56
  %v113 = vunpack.c.l.b16 %v57
  %v114 = vunpack.c.l.b16 %v58
  %v115 = vpack.c.b16 %v100, %v99
  %v116 = vpack.c.b16 %v102, %v101
  %v117 = vpack.c.b16 %v104, %v103
  %v118 = vpack.c.b16 %v106, %v105
  %v119 = vpack.c.b16 %v108, %v107
  %v120 = vpack.c.b16 %v110, %v109
  %v121 = vpack.c.b16 %v112, %v111
  %v122 = vpack.c.b16 %v114, %v113
  %131 = vmatprep.subr.bf16.mxu0 0
  %132 = vmatpush1.bf16.msra.mxu0 %v115
  %133 = vmatprep.subr.bf16.mxu0 0
  %134 = vmatpush1.bf16.msra.mxu0 %v116
  %135 = vmatprep.subr.bf16.mxu0 0
  %136 = vmatpush1.bf16.msra.mxu0 %v117
  %137 = vmatprep.subr.bf16.mxu0 0
  %138 = vmatpush1.bf16.msra.mxu0 %v118
  %139 = vmatprep.subr.bf16.mxu0 0
  %140 = vmatpush1.bf16.msra.mxu0 %v119
  %141 = vmatprep.subr.bf16.mxu0 0
  %142 = vmatpush1.bf16.msra.mxu0 %v120
  %143 = vmatprep.subr.bf16.mxu0 0
  %144 = vmatpush1.bf16.msra.mxu0 %v121
  %145 = vmatprep.subr.bf16.mxu0 0
  %146 = vmatpush1.bf16.msra.mxu0 %v122
  %147 = vmatprep.subr.bf16.mxu0 0
  %148 = vmatpush1.bf16.msra.mxu0 0
  %149 = vmatprep.subr.bf16.mxu0 0
  %150 = vmatpush1.bf16.msra.mxu0 0
  %151 = vmatprep.subr.bf16.mxu0 0
  %152 = vmatpush1.bf16.msra.mxu0 0
  %153 = vmatprep.subr.bf16.mxu0 0
  %154 = vmatpush1.bf16.msra.mxu0 0
  %155 = vmatprep.subr.bf16.mxu0 0
  %156 = vmatpush1.bf16.msra.mxu0 0
  %157 = vmatprep.subr.bf16.mxu0 0
  %158 = vmatpush1.bf16.msra.mxu0 0
  %159 = vmatprep.subr.bf16.mxu0 0
  %160 = vmatpush1.bf16.msra.mxu0 0
  %161 = vmatprep.subr.bf16.mxu0 0
  %162 = vmatpush1.bf16.msra.mxu0 0
  %163 = vmatprep.mubr.bf16.mxu0 0
  %164 = vmatmul.mubr.bf16.gmra.mrb[0].mxu0 %v75
  %v165 = vpop.f32.mrb[0].mxu0
  %v166 = vadd.f32 0.0, %v165
  %v167 = vpop.f32.mrb[0].mxu0
  %v168 = vpop.f32.mrb[0].mxu0
  %v169 = vadd.f32 0.0, %v168
  %v170 = vpop.f32.mrb[0].mxu0
  %171 = vmatprep.mubr.bf16.mxu0 0
  %172 = vmatmul.mubr.bf16.gmra.mrb[0].mxu0 %v76
  %v173 = vpop.f32.mrb[0].mxu0
  %v174 = vadd.f32 0.0, %v173
  %v175 = vpop.f32.mrb[0].mxu0
  %v176 = vpop.f32.mrb[0].mxu0
  %v177 = vadd.f32 0.0, %v176
  %v178 = vpop.f32.mrb[0].mxu0
  %179 = vmatprep.mubr.bf16.mxu0 0
  %180 = vmatmul.mubr.bf16.gmra.mrb[0].mxu0 %v77
  %v181 = vpop.f32.mrb[0].mxu0
  %v182 = vadd.f32 0.0, %v181
  %v183 = vpop.f32.mrb[0].mxu0
  %v184 = vpop.f32.mrb[0].mxu0
  %v185 = vadd.f32 0.0, %v184
  %v186 = vpop.f32.mrb[0].mxu0
  %187 = vmatprep.mubr.bf16.mxu0 0
  %188 = vmatmul.mubr.bf16.gmra.mrb[0].mxu0 %v78
  %v189 = vpop.f32.mrb[0].mxu0
  %v190 = vadd.f32 0.0, %v189
  %v191 = vpop.f32.mrb[0].mxu0
  %v192 = vpop.f32.mrb[0].mxu0
  %v193 = vadd.f32 0.0, %v192
  %v194 = vpop.f32.mrb[0].mxu0
  %195 = vdwg.mxu0
  %v196 = vadd.f32 %v27, %v166
  %v197 = vadd.f32 %v28, %v169
  %v198 = vadd.f32 %v29, %v174
  %v199 = vadd.f32 %v30, %v177
  %v200 = vadd.f32 %v31, %v182
  %v201 = vadd.f32 %v32, %v185
  %v202 = vadd.f32 %v33, %v190
  %v203 = vadd.f32 %v34, %v193
  %204 = vst [vmem:[#allocation2] sm:$0xff] %v196
  %205 = vst [vmem:[#allocation2 + $0x8] sm:$0xff] %v197
  %206 = vst [vmem:[#allocation2 + $0x10] sm:$0xff] %v198
  %207 = vst [vmem:[#allocation2 + $0x18] sm:$0xff] %v199
  %208 = vst [vmem:[#allocation2 + $0x20] sm:$0xff] %v200
  %209 = vst [vmem:[#allocation2 + $0x28] sm:$0xff] %v201
  %210 = vst [vmem:[#allocation2 + $0x30] sm:$0xff] %v202
  %211 = vst [vmem:[#allocation2 + $0x38] sm:$0xff] %v203
  // Predicated region
  $region18: #{pg_discriminator_forward.3} parent=0 // pred_check
    %p212 = pneg %p15
  $region19: #{pg_discriminator_forward.3} parent=0 // pred_check_branch
    %214 = sbr.rel (%p212) target = $region21
  $region20: #{pg_discriminator_forward.3} parent=0 // pred_region
    %v215 = vld [vmem:[#allocation2] sm:$0xff]
    %v216 = vld [vmem:[#allocation2 + $0x8] sm:$0xff]
    %v217 = vld [vmem:[#allocation2 + $0x10] sm:$0xff]
    %v218 = vld [vmem:[#allocation2 + $0x18] sm:$0xff]
    %v219 = vld [vmem:[#allocation2 + $0x20] sm:$0xff]
    %v220 = vld [vmem:[#allocation2 + $0x28] sm:$0xff]
    %v221 = vld [vmem:[#allocation2 + $0x30] sm:$0xff]
    %v222 = vld [vmem:[#allocation2 + $0x38] sm:$0xff]
    %v223 = vld [vmem:[%s2] sm:$0x1]
    %v225 = vlaneseq
    %v226 = vshrl.u32 %v225, 7
    %v227 = vsub.s32 0, %v226
    %v228 = vrot.slane %v223, %v227
    %v230 = vadd.f32 %v215, %v228
    %v231 = vadd.f32 %v216, %v228
    %v232 = vadd.f32 %v217, %v228
    %v233 = vadd.f32 %v218, %v228
    %v234 = vadd.f32 %v219, %v228
    %v235 = vadd.f32 %v220, %v228
    %v236 = vadd.f32 %v221, %v228
    %v237 = vadd.f32 %v222, %v228
    %238 = vst [vmem:[%s3] sm:$0xff] %v230
    %239 = vst [vmem:[%s3 + $0x8] sm:$0xff] %v231
    %240 = vst [vmem:[%s3 + $0x10] sm:$0xff] %v232
    %241 = vst [vmem:[%s3 + $0x18] sm:$0xff] %v233
    %242 = vst [vmem:[%s3 + $0x20] sm:$0xff] %v234
    %243 = vst [vmem:[%s3 + $0x28] sm:$0xff] %v235
    %244 = vst [vmem:[%s3 + $0x30] sm:$0xff] %v236
    %245 = vst [vmem:[%s3 + $0x38] sm:$0xff] %v237
  $region21: #{pg_discriminator_forward.3} parent=0 // pred_fallthru
    _
  // Predicated region
  $region22: #{pg_discriminator_forward.3} parent=0 // pred_check
    _
  $region23: #{pg_discriminator_forward.3} parent=0 // pred_check_branch
    %247 = sbr.rel (0) target = $region25
  $region24: #{pg_discriminator_forward.3} parent=0 // pred_region
    _
  $region25: #{pg_discriminator_forward.3} parent=0 // pred_fallthru
    _
  // Predicated region
  $region26: #{pg_discriminator_forward.3} parent=0 // pred_check
    _
  $region27: #{pg_discriminator_forward.3} parent=0 // pred_check_branch
    %249 = sbr.rel (0) target = $region29
  $region28: #{pg_discriminator_forward.3} parent=0 // pred_region
    _
  $region29: #{pg_discriminator_forward.3} parent=0 // pred_fallthru
    _

// kernel: pg_discriminator_forward.4
$region0: #{pg_discriminator_forward.4}
  #allocation0 [shape = 'u32[]', space=smem, size = 0x4, offset = 0x4, fixed_abs, tag = 'smem constant byte address 0x4 - core index']
  #allocation1 [shape = 'u32[144,128]{1,0:T(1,128)}', space=vmem, size = 0x12000, scoped, tag = 'internal scratch']
  #allocation2 [shape = 'f32[64,128]{1,0:T(8,128)}', space=vmem, size = 0x8000, scoped, tag = 'scratch operand']
  %s0 = inlined_call_operand.vmem [shape: bf16[64,384], index: 0, kind: input, shape index: {}]
  %s1 = inlined_call_operand.vmem [shape: bf16[384,128], index: 1, kind: input, shape index: {}]
  %s2 = inlined_call_operand.vmem [shape: f32[1,128], index: 2, kind: input, shape index: {}]
  %s3 = inlined_call_operand.vmem [shape: f32[64,128], index: 3, kind: output, shape index: {}]
  %s4 = sld [smem:[#allocation0]]
  $region30: #{pg_discriminator_forward.4} parent=0
    _
  %s6 = ssub.s32 1, %s4
  %s7 = scalar_select 0, %s6, %s4
  // Predicated region
  $region2: #{pg_discriminator_forward.4} parent=0 // pred_check
    _
  $region3: #{pg_discriminator_forward.4} parent=0 // pred_check_branch
    %9 = sbr.rel (0) target = $region5
  $region4: #{pg_discriminator_forward.4} parent=0 // pred_region
    _
  $region5: #{pg_discriminator_forward.4} parent=0 // pred_fallthru
    _
  // Predicated region
  $region6: #{pg_discriminator_forward.4} parent=0 // pred_check
    _
  $region7: #{pg_discriminator_forward.4} parent=0 // pred_check_branch
    %11 = sbr.rel (0) target = $region9
  $region8: #{pg_discriminator_forward.4} parent=0 // pred_region
    _
  $region9: #{pg_discriminator_forward.4} parent=0 // pred_fallthru
    _
  // Predicated region
  $region10: #{pg_discriminator_forward.4} parent=0 // pred_check
    _
  $region11: #{pg_discriminator_forward.4} parent=0 // pred_check_branch
    %13 = sbr.rel (0) target = $region13
  $region12: #{pg_discriminator_forward.4} parent=0 // pred_region
    _
  $region13: #{pg_discriminator_forward.4} parent=0 // pred_fallthru
    _
  %p15 = scmp.eq.s32.totalorder 0, 0
  // Predicated region
  $region14: #{pg_discriminator_forward.4} parent=0 // pred_check
    %p16 = pneg %p15
  $region15: #{pg_discriminator_forward.4} parent=0 // pred_check_branch
    %18 = sbr.rel (%p16) target = $region17
  $region16: #{pg_discriminator_forward.4} parent=0 // pred_region
    %19 = vst [vmem:[#allocation2] sm:$0xff] 0.0
    %20 = vst [vmem:[#allocation2 + $0x8] sm:$0xff] 0.0
    %21 = vst [vmem:[#allocation2 + $0x10] sm:$0xff] 0.0
    %22 = vst [vmem:[#allocation2 + $0x18] sm:$0xff] 0.0
    %23 = vst [vmem:[#allocation2 + $0x20] sm:$0xff] 0.0
    %24 = vst [vmem:[#allocation2 + $0x28] sm:$0xff] 0.0
    %25 = vst [vmem:[#allocation2 + $0x30] sm:$0xff] 0.0
    %26 = vst [vmem:[#allocation2 + $0x38] sm:$0xff] 0.0
  $region17: #{pg_discriminator_forward.4} parent=0 // pred_fallthru
    _
  %v27 = vld [vmem:[#allocation2] sm:$0xff]
  %v28 = vld [vmem:[#allocation2 + $0x8] sm:$0xff]
  %v29 = vld [vmem:[#allocation2 + $0x10] sm:$0xff]
  %v30 = vld [vmem:[#allocation2 + $0x18] sm:$0xff]
  %v31 = vld [vmem:[#allocation2 + $0x20] sm:$0xff]
  %v32 = vld [vmem:[#allocation2 + $0x28] sm:$0xff]
  %v33 = vld [vmem:[#allocation2 + $0x30] sm:$0xff]
  %v34 = vld [vmem:[#allocation2 + $0x38] sm:$0xff]
  %v35 = vld [vmem:[%s0] sm:$0xff]
  %v36 = vld [vmem:[%s0 + $0x8] sm:$0xf]
  %v37 = vld [vmem:[%s0 + $0xc] sm:$0xff]
  %v38 = vld [vmem:[%s0 + $0x14] sm:$0xf]
  %v39 = vld [vmem:[%s0 + $0x18] sm:$0xff]
  %v40 = vld [vmem:[%s0 + $0x20] sm:$0xf]
  %v41 = vld [vmem:[%s0 + $0x24] sm:$0xff]
  %v42 = vld [vmem:[%s0 + $0x2c] sm:$0xf]
  %v43 = vld [vmem:[%s0 + $0x30] sm:$0xff]
  %v44 = vld [vmem:[%s0 + $0x38] sm:$0xf]
  %v45 = vld [vmem:[%s0 + $0x3c] sm:$0xff]
  %v46 = vld [vmem:[%s0 + $0x44] sm:$0xf]
  %v47 = vld [vmem:[%s0 + $0x48] sm:$0xff]
  %v48 = vld [vmem:[%s0 + $0x50] sm:$0xf]
  %v49 = vld [vmem:[%s0 + $0x54] sm:$0xff]
  %v50 = vld [vmem:[%s0 + $0x5c] sm:$0xf]
  %v51 = vld [vmem:[%s1] sm:$0xf]
  %v52 = vld [vmem:[%s1 + $0x4] sm:$0xf]
  %v53 = vld [vmem:[%s1 + $0x8] sm:$0xf]
  %v54 = vld [vmem:[%s1 + $0xc] sm:$0xf]
  %v55 = vld [vmem:[%s1 + $0x10] sm:$0xf]
  %v56 = vld [vmem:[%s1 + $0x14] sm:$0xf]
  %v57 = vld [vmem:[%s1 + $0x18] sm:$0xf]
  %v58 = vld [vmem:[%s1 + $0x1c] sm:$0xf]
  %v59 = vld [vmem:[%s1 + $0x20] sm:$0xf]
  %v60 = vld [vmem:[%s1 + $0x24] sm:$0xf]
  %v61 = vld [vmem:[%s1 + $0x28] sm:$0xf]
  %v62 = vld [vmem:[%s1 + $0x2c] sm:$0xf]
  %v63 = vld [vmem:[%s1 + $0x30] sm:$0xf]
  %v64 = vld [vmem:[%s1 + $0x34] sm:$0xf]
  %v65 = vld [vmem:[%s1 + $0x38] sm:$0xf]
  %v66 = vld [vmem:[%s1 + $0x3c] sm:$0xf]
  %v67 = vld [vmem:[%s1 + $0x40] sm:$0xf]
  %v68 = vld [vmem:[%s1 + $0x44] sm:$0xf]
  %v69 = vld [vmem:[%s1 + $0x48] sm:$0xf]
  %v70 = vld [vmem:[%s1 + $0x4c] sm:$0xf]
  %v71 = vld [vmem:[%s1 + $0x50] sm:$0xf]
  %v72 = vld [vmem:[%s1 + $0x54] sm:$0xf]
  %v73 = vld [vmem:[%s1 + $0x58] sm:$0xf]
  %v74 = vld [vmem:[%s1 + $0x5c] sm:$0xf]
  %v75 = vld [vmem:[%s1 + $0x60] sm:$0xf]
  %v76 = vld [vmem:[%s1 + $0x64] sm:$0xf]
  %v77 = vld [vmem:[%s1 + $0x68] sm:$0xf]
  %v78 = vld [vmem:[%s1 + $0x6c] sm:$0xf]
  %v79 = vld [vmem:[%s1 + $0x70] sm:$0xf]
  %v80 = vld [vmem:[%s1 + $0x74] sm:$0xf]
  %v81 = vld [vmem:[%s1 + $0x78] sm:$0xf]
  %v82 = vld [vmem:[%s1 + $0x7c] sm:$0xf]
  %v83 = vld [vmem:[%s1 + $0x80] sm:$0xf]
  %v84 = vld [vmem:[%s1 + $0x84] sm:$0xf]
  %v85 = vld [vmem:[%s1 + $0x88] sm:$0xf]
  %v86 = vld [vmem:[%s1 + $0x8c] sm:$0xf]
  %v87 = vld [vmem:[%s1 + $0x90] sm:$0xf]
  %v88 = vld [vmem:[%s1 + $0x94] sm:$0xf]
  %v89 = vld [vmem:[%s1 + $0x98] sm:$0xf]
  %v90 = vld [vmem:[%s1 + $0x9c] sm:$0xf]
  %v91 = vld [vmem:[%s1 + $0xa0] sm:$0xf]
  %v92 = vld [vmem:[%s1 + $0xa4] sm:$0xf]
  %v93 = vld [vmem:[%s1 + $0xa8] sm:$0xf]
  %v94 = vld [vmem:[%s1 + $0xac] sm:$0xf]
  %v95 = vld [vmem:[%s1 + $0xb0] sm:$0xf]
  %v96 = vld [vmem:[%s1 + $0xb4] sm:$0xf]
  %v97 = vld [vmem:[%s1 + $0xb8] sm:$0xf]
  %v98 = vld [vmem:[%s1 + $0xbc] sm:$0xf]
  %v115 = vunpack.c.l.b16 %v35
  %v116 = vunpack.c.h.b16 %v35
  %v117 = vunpack.c.l.b16 %v36
  %v118 = vunpack.c.l.b16 %v37
  %v119 = vunpack.c.h.b16 %v37
  %v120 = vunpack.c.l.b16 %v38
  %v121 = vunpack.c.l.b16 %v39
  %v122 = vunpack.c.h.b16 %v39
  %v123 = vunpack.c.l.b16 %v40
  %v124 = vunpack.c.l.b16 %v41
  %v125 = vunpack.c.h.b16 %v41
  %v126 = vunpack.c.l.b16 %v42
  %v127 = vunpack.c.l.b16 %v43
  %v128 = vunpack.c.h.b16 %v43
  %v129 = vunpack.c.l.b16 %v44
  %v130 = vunpack.c.l.b16 %v45
  %v131 = vunpack.c.h.b16 %v45
  %v132 = vunpack.c.l.b16 %v46
  %v133 = vunpack.c.l.b16 %v47
  %v134 = vunpack.c.h.b16 %v47
  %v135 = vunpack.c.l.b16 %v48
  %v136 = vunpack.c.l.b16 %v49
  %v137 = vunpack.c.h.b16 %v49
  %v138 = vunpack.c.l.b16 %v50
  %v139 = vpack.c.b16 %v118, %v115
  %v140 = vpack.c.b16 %v119, %v116
  %v141 = vpack.c.b16 %v120, %v117
  %v142 = vpack.c.b16 %v124, %v121
  %v143 = vpack.c.b16 %v125, %v122
  %v144 = vpack.c.b16 %v126, %v123
  %v145 = vpack.c.b16 %v130, %v127
  %v146 = vpack.c.b16 %v131, %v128
  %v147 = vpack.c.b16 %v132, %v129
  %v148 = vpack.c.b16 %v136, %v133
  %v149 = vpack.c.b16 %v137, %v134
  %v150 = vpack.c.b16 %v138, %v135
  %v211 = vunpack.c.l.b16 %v51
  %v212 = vunpack.c.l.b16 %v52
  %v213 = vunpack.c.l.b16 %v53
  %v214 = vunpack.c.l.b16 %v54
  %v215 = vunpack.c.l.b16 %v55
  %v216 = vunpack.c.l.b16 %v56
  %v217 = vunpack.c.l.b16 %v57
  %v218 = vunpack.c.l.b16 %v58
  %v219 = vunpack.c.l.b16 %v59
  %v220 = vunpack.c.l.b16 %v60
  %v221 = vunpack.c.l.b16 %v61
  %v222 = vunpack.c.l.b16 %v62
  %v223 = vunpack.c.l.b16 %v63
  %v224 = vunpack.c.l.b16 %v64
  %v225 = vunpack.c.l.b16 %v65
  %v226 = vunpack.c.l.b16 %v66
  %v227 = vunpack.c.l.b16 %v67
  %v228 = vunpack.c.l.b16 %v68
  %v229 = vunpack.c.l.b16 %v69
  %v230 = vunpack.c.l.b16 %v70
  %v231 = vunpack.c.l.b16 %v71
  %v232 = vunpack.c.l.b16 %v72
  %v233 = vunpack.c.l.b16 %v73
  %v234 = vunpack.c.l.b16 %v74
  %v235 = vunpack.c.l.b16 %v75
  %v236 = vunpack.c.l.b16 %v76
  %v237 = vunpack.c.l.b16 %v77
  %v238 = vunpack.c.l.b16 %v78
  %v239 = vunpack.c.l.b16 %v79
  %v240 = vunpack.c.l.b16 %v80
  %v241 = vunpack.c.l.b16 %v81
  %v242 = vunpack.c.l.b16 %v82
  %v243 = vunpack.c.l.b16 %v83
  %v244 = vunpack.c.l.b16 %v84
  %v245 = vunpack.c.l.b16 %v85
  %v246 = vunpack.c.l.b16 %v86
  %v247 = vunpack.c.l.b16 %v87
  %v248 = vunpack.c.l.b16 %v88
  %v249 = vunpack.c.l.b16 %v89
  %v250 = vunpack.c.l.b16 %v90
  %v251 = vunpack.c.l.b16 %v91
  %v252 = vunpack.c.l.b16 %v92
  %v253 = vunpack.c.l.b16 %v93
  %v254 = vunpack.c.l.b16 %v94
  %v255 = vunpack.c.l.b16 %v95
  %v256 = vunpack.c.l.b16 %v96
  %v257 = vunpack.c.l.b16 %v97
  %v258 = vunpack.c.l.b16 %v98
  %v259 = vpack.c.b16 %v212, %v211
  %v260 = vpack.c.b16 %v214, %v213
  %v261 = vpack.c.b16 %v216, %v215
  %v262 = vpack.c.b16 %v218, %v217
  %v263 = vpack.c.b16 %v220, %v219
  %v264 = vpack.c.b16 %v222, %v221
  %v265 = vpack.c.b16 %v224, %v223
  %v266 = vpack.c.b16 %v226, %v225
  %v267 = vpack.c.b16 %v228, %v227
  %v268 = vpack.c.b16 %v230, %v229
  %v269 = vpack.c.b16 %v232, %v231
  %v270 = vpack.c.b16 %v234, %v233
  %v271 = vpack.c.b16 %v236, %v235
  %v272 = vpack.c.b16 %v238, %v237
  %v273 = vpack.c.b16 %v240, %v239
  %v274 = vpack.c.b16 %v242, %v241
  %v275 = vpack.c.b16 %v244, %v243
  %v276 = vpack.c.b16 %v246, %v245
  %v277 = vpack.c.b16 %v248, %v247
  %v278 = vpack.c.b16 %v250, %v249
  %v279 = vpack.c.b16 %v252, %v251
  %v280 = vpack.c.b16 %v254, %v253
  %v281 = vpack.c.b16 %v256, %v255
  %v282 = vpack.c.b16 %v258, %v257
  %307 = vmatprep.subr.bf16.mxu0 0
  %308 = vmatpush1.bf16.msra.mxu0 %v259
  %309 = vmatprep.subr.bf16.mxu0 0
  %310 = vmatpush1.bf16.msra.mxu0 %v260
  %311 = vmatprep.subr.bf16.mxu0 0
  %312 = vmatpush1.bf16.msra.mxu0 %v261
  %313 = vmatprep.subr.bf16.mxu0 0
  %314 = vmatpush1.bf16.msra.mxu0 %v262
  %315 = vmatprep.subr.bf16.mxu0 0
  %316 = vmatpush1.bf16.msra.mxu0 %v263
  %317 = vmatprep.subr.bf16.mxu0 0
  %318 = vmatpush1.bf16.msra.mxu0 %v264
  %319 = vmatprep.subr.bf16.mxu0 0
  %320 = vmatpush1.bf16.msra.mxu0 %v265
  %321 = vmatprep.subr.bf16.mxu0 0
  %322 = vmatpush1.bf16.msra.mxu0 %v266
  %323 = vmatprep.subr.bf16.mxu0 0
  %324 = vmatpush1.bf16.msra.mxu0 %v267
  %325 = vmatprep.subr.bf16.mxu0 0
  %326 = vmatpush1.bf16.msra.mxu0 %v268
  %327 = vmatprep.subr.bf16.mxu0 0
  %328 = vmatpush1.bf16.msra.mxu0 %v269
  %329 = vmatprep.subr.bf16.mxu0 0
  %330 = vmatpush1.bf16.msra.mxu0 %v270
  %331 = vmatprep.subr.bf16.mxu0 0
  %332 = vmatpush1.bf16.msra.mxu0 %v271
  %333 = vmatprep.subr.bf16.mxu0 0
  %334 = vmatpush1.bf16.msra.mxu0 %v272
  %335 = vmatprep.subr.bf16.mxu0 0
  %336 = vmatpush1.bf16.msra.mxu0 %v273
  %337 = vmatprep.subr.bf16.mxu0 0
  %338 = vmatpush1.bf16.msra.mxu0 %v274
  %339 = vmatprep.mubr.bf16.mxu0 %v140
  %340 = vmatmul.mubr.bf16.gmra.mrb[0].mxu0 %v139
  %v341 = vpop.f32.mrb[0].mxu0
  %v342 = vadd.f32 0.0, %v341
  %v343 = vpop.f32.mrb[0].mxu0
  %v344 = vpop.f32.mrb[0].mxu0
  %v345 = vadd.f32 0.0, %v344
  %v346 = vpop.f32.mrb[0].mxu0
  %347 = vmatprep.mubr.bf16.mxu0 %v143
  %348 = vmatmul.mubr.bf16.gmra.mrb[0].mxu0 %v142
  %v349 = vpop.f32.mrb[0].mxu0
  %v350 = vadd.f32 0.0, %v349
  %v351 = vpop.f32.mrb[0].mxu0
  %v352 = vpop.f32.mrb[0].mxu0
  %v353 = vadd.f32 0.0, %v352
  %v354 = vpop.f32.mrb[0].mxu0
  %355 = vmatprep.mubr.bf16.mxu0 %v146
  %356 = vmatmul.mubr.bf16.gmra.mrb[0].mxu0 %v145
  %v357 = vpop.f32.mrb[0].mxu0
  %v358 = vadd.f32 0.0, %v357
  %v359 = vpop.f32.mrb[0].mxu0
  %v360 = vpop.f32.mrb[0].mxu0
  %v361 = vadd.f32 0.0, %v360
  %v362 = vpop.f32.mrb[0].mxu0
  %363 = vmatprep.mubr.bf16.mxu0 %v149
  %364 = vmatmul.mubr.bf16.gmra.mrb[0].mxu0 %v148
  %v365 = vpop.f32.mrb[0].mxu0
  %v366 = vadd.f32 0.0, %v365
  %v367 = vpop.f32.mrb[0].mxu0
  %v368 = vpop.f32.mrb[0].mxu0
  %v369 = vadd.f32 0.0, %v368
  %v370 = vpop.f32.mrb[0].mxu0
  %371 = vdwg.mxu0
  %372 = vmatprep.subr.bf16.mxu0 0
  %373 = vmatpush1.bf16.msra.mxu0 %v275
  %374 = vmatprep.subr.bf16.mxu0 0
  %375 = vmatpush1.bf16.msra.mxu0 %v276
  %376 = vmatprep.subr.bf16.mxu0 0
  %377 = vmatpush1.bf16.msra.mxu0 %v277
  %378 = vmatprep.subr.bf16.mxu0 0
  %379 = vmatpush1.bf16.msra.mxu0 %v278
  %380 = vmatprep.subr.bf16.mxu0 0
  %381 = vmatpush1.bf16.msra.mxu0 %v279
  %382 = vmatprep.subr.bf16.mxu0 0
  %383 = vmatpush1.bf16.msra.mxu0 %v280
  %384 = vmatprep.subr.bf16.mxu0 0
  %385 = vmatpush1.bf16.msra.mxu0 %v281
  %386 = vmatprep.subr.bf16.mxu0 0
  %387 = vmatpush1.bf16.msra.mxu0 %v282
  %388 = vmatprep.subr.bf16.mxu0 0
  %389 = vmatpush1.bf16.msra.mxu0 0
  %390 = vmatprep.subr.bf16.mxu0 0
  %391 = vmatpush1.bf16.msra.mxu0 0
  %392 = vmatprep.subr.bf16.mxu0 0
  %393 = vmatpush1.bf16.msra.mxu0 0
  %394 = vmatprep.subr.bf16.mxu0 0
  %395 = vmatpush1.bf16.msra.mxu0 0
  %396 = vmatprep.subr.bf16.mxu0 0
  %397 = vmatpush1.bf16.msra.mxu0 0
  %398 = vmatprep.subr.bf16.mxu0 0
  %399 = vmatpush1.bf16.msra.mxu0 0
  %400 = vmatprep.subr.bf16.mxu0 0
  %401 = vmatpush1.bf16.msra.mxu0 0
  %402 = vmatprep.subr.bf16.mxu0 0
  %403 = vmatpush1.bf16.msra.mxu0 0
  %404 = vmatprep.mubr.bf16.mxu0 0
  %405 = vmatmul.mubr.bf16.gmra.mrb[0].mxu0 %v141
  %v406 = vpop.f32.mrb[0].mxu0
  %v407 = vadd.f32 %v342, %v406
  %v408 = vpop.f32.mrb[0].mxu0
  %v409 = vpop.f32.mrb[0].mxu0
  %v410 = vadd.f32 %v345, %v409
  %v411 = vpop.f32.mrb[0].mxu0
  %412 = vmatprep.mubr.bf16.mxu0 0
  %413 = vmatmul.mubr.bf16.gmra.mrb[0].mxu0 %v144
  %v414 = vpop.f32.mrb[0].mxu0
  %v415 = vadd.f32 %v350, %v414
  %v416 = vpop.f32.mrb[0].mxu0
  %v417 = vpop.f32.mrb[0].mxu0
  %v418 = vadd.f32 %v353, %v417
  %v419 = vpop.f32.mrb[0].mxu0
  %420 = vmatprep.mubr.bf16.mxu0 0
  %421 = vmatmul.mubr.bf16.gmra.mrb[0].mxu0 %v147
  %v422 = vpop.f32.mrb[0].mxu0
  %v423 = vadd.f32 %v358, %v422
  %v424 = vpop.f32.mrb[0].mxu0
  %v425 = vpop.f32.mrb[0].mxu0
  %v426 = vadd.f32 %v361, %v425
  %v427 = vpop.f32.mrb[0].mxu0
  %428 = vmatprep.mubr.bf16.mxu0 0
  %429 = vmatmul.mubr.bf16.gmra.mrb[0].mxu0 %v150
  %v430 = vpop.f32.mrb[0].mxu0
  %v431 = vadd.f32 %v366, %v430
  %v432 = vpop.f32.mrb[0].mxu0
  %v433 = vpop.f32.mrb[0].mxu0
  %v434 = vadd.f32 %v369, %v433
  %v435 = vpop.f32.mrb[0].mxu0
  %436 = vdwg.mxu0
  %v437 = vadd.f32 %v27, %v407
  %v438 = vadd.f32 %v28, %v410
  %v439 = vadd.f32 %v29, %v415
  %v440 = vadd.f32 %v30, %v418
  %v441 = vadd.f32 %v31, %v423
  %v442 = vadd.f32 %v32, %v426
  %v443 = vadd.f32 %v33, %v431
  %v444 = vadd.f32 %v34, %v434
  %445 = vst [vmem:[#allocation2] sm:$0xff] %v437
  %446 = vst [vmem:[#allocation2 + $0x8] sm:$0xff] %v438
  %447 = vst [vmem:[#allocation2 + $0x10] sm:$0xff] %v439
  %448 = vst [vmem:[#allocation2 + $0x18] sm:$0xff] %v440
  %449 = vst [vmem:[#allocation2 + $0x20] sm:$0xff] %v441
  %450 = vst [vmem:[#allocation2 + $0x28] sm:$0xff] %v442
  %451 = vst [vmem:[#allocation2 + $0x30] sm:$0xff] %v443
  %452 = vst [vmem:[#allocation2 + $0x38] sm:$0xff] %v444
  // Predicated region
  $region18: #{pg_discriminator_forward.4} parent=0 // pred_check
    %p453 = pneg %p15
  $region19: #{pg_discriminator_forward.4} parent=0 // pred_check_branch
    %455 = sbr.rel (%p453) target = $region21
  $region20: #{pg_discriminator_forward.4} parent=0 // pred_region
    %v456 = vld [vmem:[#allocation2] sm:$0xff]
    %v457 = vld [vmem:[#allocation2 + $0x8] sm:$0xff]
    %v458 = vld [vmem:[#allocation2 + $0x10] sm:$0xff]
    %v459 = vld [vmem:[#allocation2 + $0x18] sm:$0xff]
    %v460 = vld [vmem:[#allocation2 + $0x20] sm:$0xff]
    %v461 = vld [vmem:[#allocation2 + $0x28] sm:$0xff]
    %v462 = vld [vmem:[#allocation2 + $0x30] sm:$0xff]
    %v463 = vld [vmem:[#allocation2 + $0x38] sm:$0xff]
    %v464 = vld [vmem:[%s2] sm:$0x1]
    %v466 = vlaneseq
    %v467 = vshrl.u32 %v466, 7
    %v468 = vsub.s32 0, %v467
    %v469 = vrot.slane %v464, %v468
    %v471 = vadd.f32 %v456, %v469
    %v472 = vadd.f32 %v457, %v469
    %v473 = vadd.f32 %v458, %v469
    %v474 = vadd.f32 %v459, %v469
    %v475 = vadd.f32 %v460, %v469
    %v476 = vadd.f32 %v461, %v469
    %v477 = vadd.f32 %v462, %v469
    %v478 = vadd.f32 %v463, %v469
    %vm479 = vcmp.ge.f32.partialorder %v471, 0.0
    %vm480 = vcmp.ge.f32.partialorder %v472, 0.0
    %vm481 = vcmp.ge.f32.partialorder %v473, 0.0
    %vm482 = vcmp.ge.f32.partialorder %v474, 0.0
    %vm483 = vcmp.ge.f32.partialorder %v475, 0.0
    %vm484 = vcmp.ge.f32.partialorder %v476, 0.0
    %vm485 = vcmp.ge.f32.partialorder %v477, 0.0
    %vm486 = vcmp.ge.f32.partialorder %v478, 0.0
    %v487 = vmul.f32 %v471, 0.2
    %v488 = vmul.f32 %v472, 0.2
    %v489 = vmul.f32 %v473, 0.2
    %v490 = vmul.f32 %v474, 0.2
    %v491 = vmul.f32 %v475, 0.2
    %v492 = vmul.f32 %v476, 0.2
    %v493 = vmul.f32 %v477, 0.2
    %v494 = vmul.f32 %v478, 0.2
    %v495 = vsel %vm479, %v471, %v487
    %v496 = vsel %vm480, %v472, %v488
    %v497 = vsel %vm481, %v473, %v489
    %v498 = vsel %vm482, %v474, %v490
    %v499 = vsel %vm483, %v475, %v491
    %v500 = vsel %vm484, %v476, %v492
    %v501 = vsel %vm485, %v477, %v493
    %v502 = vsel %vm486, %v478, %v494
    %503 = vst [vmem:[%s3] sm:$0xff] %v495
    %504 = vst [vmem:[%s3 + $0x8] sm:$0xff] %v496
    %505 = vst [vmem:[%s3 + $0x10] sm:$0xff] %v497
    %506 = vst [vmem:[%s3 + $0x18] sm:$0xff] %v498
    %507 = vst [vmem:[%s3 + $0x20] sm:$0xff] %v499
    %508 = vst [vmem:[%s3 + $0x28] sm:$0xff] %v500
    %509 = vst [vmem:[%s3 + $0x30] sm:$0xff] %v501
    %510 = vst [vmem:[%s3 + $0x38] sm:$0xff] %v502
  $region21: #{pg_discriminator_forward.4} parent=0 // pred_fallthru
    _
  // Predicated region
  $region22: #{pg_discriminator_forward.4} parent=0 // pred_check
    _
  $region23: #{pg_discriminator_forward.4} parent=0 // pred_check_branch
    %512 = sbr.rel (0) target = $region25
  $region24: #{pg_discriminator_forward.4} parent=0 // pred_region
    _
  $region25: #{pg_discriminator_forward.4} parent=0 // pred_fallthru
    _
  // Predicated region
  $region26: #{pg_discriminator_forward.4} parent=0 // pred_check
    _
  $region27: #{pg_discriminator_forward.4} parent=0 // pred_check_branch
    %514 = sbr.rel (0) target = $region29
  $region28: #{pg_discriminator_forward.4} parent=0 // pred_region
    _
  $region29: #{pg_discriminator_forward.4} parent=0 // pred_fallthru
    _

// kernel: pg_discriminator_forward.5
$region0: #{pg_discriminator_forward.5}
  #allocation0 [shape = 'u32[]', space=smem, size = 0x4, offset = 0x4, fixed_abs, tag = 'smem constant byte address 0x4 - core index']
  #allocation1 [shape = 'u32[144,128]{1,0:T(1,128)}', space=vmem, size = 0x12000, scoped, tag = 'internal scratch']
  %s0 = inlined_call_operand.vmem [shape: bf16[8,512], index: 0, kind: input, shape index: {}]
  %s1 = inlined_call_operand.vmem [shape: bf16[512,128], index: 1, kind: input, shape index: {}]
  %s2 = inlined_call_operand.vmem [shape: f32[1,128], index: 2, kind: input, shape index: {}]
  %s3 = inlined_call_operand.vmem [shape: bf16[128,128], index: 3, kind: input, shape index: {}]
  %s4 = inlined_call_operand.vmem [shape: f32[1,128], index: 4, kind: input, shape index: {}]
  %s5 = inlined_call_operand.vmem [shape: f32[8,128], index: 5, kind: output, shape index: {}]
  %s6 = sld [smem:[#allocation0]]
  $region30: #{pg_discriminator_forward.5} parent=0
    _
  %s8 = ssub.s32 1, %s6
  %s9 = scalar_select 0, %s8, %s6
  // Predicated region
  $region2: #{pg_discriminator_forward.5} parent=0 // pred_check
    _
  $region3: #{pg_discriminator_forward.5} parent=0 // pred_check_branch
    %11 = sbr.rel (0) target = $region5
  $region4: #{pg_discriminator_forward.5} parent=0 // pred_region
    _
  $region5: #{pg_discriminator_forward.5} parent=0 // pred_fallthru
    _
  // Predicated region
  $region6: #{pg_discriminator_forward.5} parent=0 // pred_check
    _
  $region7: #{pg_discriminator_forward.5} parent=0 // pred_check_branch
    %13 = sbr.rel (0) target = $region9
  $region8: #{pg_discriminator_forward.5} parent=0 // pred_region
    _
  $region9: #{pg_discriminator_forward.5} parent=0 // pred_fallthru
    _
  // Predicated region
  $region10: #{pg_discriminator_forward.5} parent=0 // pred_check
    _
  $region11: #{pg_discriminator_forward.5} parent=0 // pred_check_branch
    %15 = sbr.rel (0) target = $region13
  $region12: #{pg_discriminator_forward.5} parent=0 // pred_region
    _
  $region13: #{pg_discriminator_forward.5} parent=0 // pred_fallthru
    _
  // Predicated region
  $region14: #{pg_discriminator_forward.5} parent=0 // pred_check
    _
  $region15: #{pg_discriminator_forward.5} parent=0 // pred_check_branch
    %17 = sbr.rel (0) target = $region17
  $region16: #{pg_discriminator_forward.5} parent=0 // pred_region
    _
  $region17: #{pg_discriminator_forward.5} parent=0 // pred_fallthru
    _
  // Predicated region
  $region18: #{pg_discriminator_forward.5} parent=0 // pred_check
    _
  $region19: #{pg_discriminator_forward.5} parent=0 // pred_check_branch
    %19 = sbr.rel (0) target = $region21
  $region20: #{pg_discriminator_forward.5} parent=0 // pred_region
    _
  $region21: #{pg_discriminator_forward.5} parent=0 // pred_fallthru
    _
  %v21 = vld [vmem:[%s0] sm:$0xff]
  %v22 = vld [vmem:[%s0 + $0x8] sm:$0xff]
  %v23 = vld [vmem:[%s1] sm:$0xf]
  %v24 = vld [vmem:[%s1 + $0x4] sm:$0xf]
  %v25 = vld [vmem:[%s1 + $0x8] sm:$0xf]
  %v26 = vld [vmem:[%s1 + $0xc] sm:$0xf]
  %v27 = vld [vmem:[%s1 + $0x10] sm:$0xf]
  %v28 = vld [vmem:[%s1 + $0x14] sm:$0xf]
  %v29 = vld [vmem:[%s1 + $0x18] sm:$0xf]
  %v30 = vld [vmem:[%s1 + $0x1c] sm:$0xf]
  %v31 = vld [vmem:[%s1 + $0x20] sm:$0xf]
  %v32 = vld [vmem:[%s1 + $0x24] sm:$0xf]
  %v33 = vld [vmem:[%s1 + $0x28] sm:$0xf]
  %v34 = vld [vmem:[%s1 + $0x2c] sm:$0xf]
  %v35 = vld [vmem:[%s1 + $0x30] sm:$0xf]
  %v36 = vld [vmem:[%s1 + $0x34] sm:$0xf]
  %v37 = vld [vmem:[%s1 + $0x38] sm:$0xf]
  %v38 = vld [vmem:[%s1 + $0x3c] sm:$0xf]
  %v39 = vld [vmem:[%s1 + $0x40] sm:$0xf]
  %v40 = vld [vmem:[%s1 + $0x44] sm:$0xf]
  %v41 = vld [vmem:[%s1 + $0x48] sm:$0xf]
  %v42 = vld [vmem:[%s1 + $0x4c] sm:$0xf]
  %v43 = vld [vmem:[%s1 + $0x50] sm:$0xf]
  %v44 = vld [vmem:[%s1 + $0x54] sm:$0xf]
  %v45 = vld [vmem:[%s1 + $0x58] sm:$0xf]
  %v46 = vld [vmem:[%s1 + $0x5c] sm:$0xf]
  %v47 = vld [vmem:[%s1 + $0x60] sm:$0xf]
  %v48 = vld [vmem:[%s1 + $0x64] sm:$0xf]
  %v49 = vld [vmem:[%s1 + $0x68] sm:$0xf]
  %v50 = vld [vmem:[%s1 + $0x6c] sm:$0xf]
  %v51 = vld [vmem:[%s1 + $0x70] sm:$0xf]
  %v52 = vld [vmem:[%s1 + $0x74] sm:$0xf]
  %v53 = vld [vmem:[%s1 + $0x78] sm:$0xf]
  %v54 = vld [vmem:[%s1 + $0x7c] sm:$0xf]
  %v55 = vld [vmem:[%s1 + $0x80] sm:$0xf]
  %v56 = vld [vmem:[%s1 + $0x84] sm:$0xf]
  %v57 = vld [vmem:[%s1 + $0x88] sm:$0xf]
  %v58 = vld [vmem:[%s1 + $0x8c] sm:$0xf]
  %v59 = vld [vmem:[%s1 + $0x90] sm:$0xf]
  %v60 = vld [vmem:[%s1 + $0x94] sm:$0xf]
  %v61 = vld [vmem:[%s1 + $0x98] sm:$0xf]
  %v62 = vld [vmem:[%s1 + $0x9c] sm:$0xf]
  %v63 = vld [vmem:[%s1 + $0xa0] sm:$0xf]
  %v64 = vld [vmem:[%s1 + $0xa4] sm:$0xf]
  %v65 = vld [vmem:[%s1 + $0xa8] sm:$0xf]
  %v66 = vld [vmem:[%s1 + $0xac] sm:$0xf]
  %v67 = vld [vmem:[%s1 + $0xb0] sm:$0xf]
  %v68 = vld [vmem:[%s1 + $0xb4] sm:$0xf]
  %v69 = vld [vmem:[%s1 + $0xb8] sm:$0xf]
  %v70 = vld [vmem:[%s1 + $0xbc] sm:$0xf]
  %v71 = vld [vmem:[%s1 + $0xc0] sm:$0xf]
  %v72 = vld [vmem:[%s1 + $0xc4] sm:$0xf]
  %v73 = vld [vmem:[%s1 + $0xc8] sm:$0xf]
  %v74 = vld [vmem:[%s1 + $0xcc] sm:$0xf]
  %v75 = vld [vmem:[%s1 + $0xd0] sm:$0xf]
  %v76 = vld [vmem:[%s1 + $0xd4] sm:$0xf]
  %v77 = vld [vmem:[%s1 + $0xd8] sm:$0xf]
  %v78 = vld [vmem:[%s1 + $0xdc] sm:$0xf]
  %v79 = vld [vmem:[%s1 + $0xe0] sm:$0xf]
  %v80 = vld [vmem:[%s1 + $0xe4] sm:$0xf]
  %v81 = vld [vmem:[%s1 + $0xe8] sm:$0xf]
  %v82 = vld [vmem:[%s1 + $0xec] sm:$0xf]
  %v83 = vld [vmem:[%s1 + $0xf0] sm:$0xf]
  %v84 = vld [vmem:[%s1 + $0xf4] sm:$0xf]
  %v85 = vld [vmem:[%s1 + $0xf8] sm:$0xf]
  %v86 = vld [vmem:[%s1 + $0xfc] sm:$0xf]
  %v87 = vld [vmem:[%s2] sm:$0x1]
  %v89 = vlaneseq
  %v90 = vshrl.u32 %v89, 7
  %v91 = vsub.s32 0, %v90
  %v92 = vrot.slane %v87, %v91
  %v96 = vunpack.c.l.b16 %v21
  %v97 = vunpack.c.h.b16 %v21
  %v98 = vunpack.c.l.b16 %v22
  %v99 = vunpack.c.h.b16 %v22
  %v100 = vpack.c.b16 %v96, %v96
  %v101 = vpack.c.b16 %v97, %v97
  %v102 = vpack.c.b16 %v98, %v98
  %v103 = vpack.c.b16 %v99, %v99
  %v172 = vunpack.c.l.b16 %v23
  %v173 = vunpack.c.l.b16 %v24
  %v174 = vunpack.c.l.b16 %v25
  %v175 = vunpack.c.l.b16 %v26
  %v176 = vunpack.c.l.b16 %v27
  %v177 = vunpack.c.l.b16 %v28
  %v178 = vunpack.c.l.b16 %v29
  %v179 = vunpack.c.l.b16 %v30
  %v180 = vunpack.c.l.b16 %v31
  %v181 = vunpack.c.l.b16 %v32
  %v182 = vunpack.c.l.b16 %v33
  %v183 = vunpack.c.l.b16 %v34
  %v184 = vunpack.c.l.b16 %v35
  %v185 = vunpack.c.l.b16 %v36
  %v186 = vunpack.c.l.b16 %v37
  %v187 = vunpack.c.l.b16 %v38
  %v188 = vunpack.c.l.b16 %v39
  %v189 = vunpack.c.l.b16 %v40
  %v190 = vunpack.c.l.b16 %v41
  %v191 = vunpack.c.l.b16 %v42
  %v192 = vunpack.c.l.b16 %v43
  %v193 = vunpack.c.l.b16 %v44
  %v194 = vunpack.c.l.b16 %v45
  %v195 = vunpack.c.l.b16 %v46
  %v196 = vunpack.c.l.b16 %v47
  %v197 = vunpack.c.l.b16 %v48
  %v198 = vunpack.c.l.b16 %v49
  %v199 = vunpack.c.l.b16 %v50
  %v200 = vunpack.c.l.b16 %v51
  %v201 = vunpack.c.l.b16 %v52
  %v202 = vunpack.c.l.b16 %v53
  %v203 = vunpack.c.l.b16 %v54
  %v204 = vunpack.c.l.b16 %v55
  %v205 = vunpack.c.l.b16 %v56
  %v206 = vunpack.c.l.b16 %v57
  %v207 = vunpack.c.l.b16 %v58
  %v208 = vunpack.c.l.b16 %v59
  %v209 = vunpack.c.l.b16 %v60
  %v210 = vunpack.c.l.b16 %v61
  %v211 = vunpack.c.l.b16 %v62
  %v212 = vunpack.c.l.b16 %v63
  %v213 = vunpack.c.l.b16 %v64
  %v214 = vunpack.c.l.b16 %v65
  %v215 = vunpack.c.l.b16 %v66
  %v216 = vunpack.c.l.b16 %v67
  %v217 = vunpack.c.l.b16 %v68
  %v218 = vunpack.c.l.b16 %v69
  %v219 = vunpack.c.l.b16 %v70
  %v220 = vunpack.c.l.b16 %v71
  %v221 = vunpack.c.l.b16 %v72
  %v222 = vunpack.c.l.b16 %v73
  %v223 = vunpack.c.l.b16 %v74
  %v224 = vunpack.c.l.b16 %v75
  %v225 = vunpack.c.l.b16 %v76
  %v226 = vunpack.c.l.b16 %v77
  %v227 = vunpack.c.l.b16 %v78
  %v228 = vunpack.c.l.b16 %v79
  %v229 = vunpack.c.l.b16 %v80
  %v230 = vunpack.c.l.b16 %v81
  %v231 = vunpack.c.l.b16 %v82
  %v232 = vunpack.c.l.b16 %v83
  %v233 = vunpack.c.l.b16 %v84
  %v234 = vunpack.c.l.b16 %v85
  %v235 = vunpack.c.l.b16 %v86
  %v236 = vpack.c.b16 %v173, %v172
  %v237 = vpack.c.b16 %v175, %v174
  %v238 = vpack.c.b16 %v177, %v176
  %v239 = vpack.c.b16 %v179, %v178
  %v240 = vpack.c.b16 %v181, %v180
  %v241 = vpack.c.b16 %v183, %v182
  %v242 = vpack.c.b16 %v185, %v184
  %v243 = vpack.c.b16 %v187, %v186
  %v244 = vpack.c.b16 %v189, %v188
  %v245 = vpack.c.b16 %v191, %v190
  %v246 = vpack.c.b16 %v193, %v192
  %v247 = vpack.c.b16 %v195, %v194
  %v248 = vpack.c.b16 %v197, %v196
  %v249 = vpack.c.b16 %v199, %v198
  %v250 = vpack.c.b16 %v201, %v200
  %v251 = vpack.c.b16 %v203, %v202
  %v252 = vpack.c.b16 %v205, %v204
  %v253 = vpack.c.b16 %v207, %v206
  %v254 = vpack.c.b16 %v209, %v208
  %v255 = vpack.c.b16 %v211, %v210
  %v256 = vpack.c.b16 %v213, %v212
  %v257 = vpack.c.b16 %v215, %v214
  %v258 = vpack.c.b16 %v217, %v216
  %v259 = vpack.c.b16 %v219, %v218
  %v260 = vpack.c.b16 %v221, %v220
  %v261 = vpack.c.b16 %v223, %v222
  %v262 = vpack.c.b16 %v225, %v224
  %v263 = vpack.c.b16 %v227, %v226
  %v264 = vpack.c.b16 %v229, %v228
  %v265 = vpack.c.b16 %v231, %v230
  %v266 = vpack.c.b16 %v233, %v232
  %v267 = vpack.c.b16 %v235, %v234
  %300 = vmatprep.subr.bf16.mxu0 0
  %301 = vmatpush1.bf16.msra.mxu0 %v236
  %302 = vmatprep.subr.bf16.mxu0 0
  %303 = vmatpush1.bf16.msra.mxu0 %v237
  %304 = vmatprep.subr.bf16.mxu0 0
  %305 = vmatpush1.bf16.msra.mxu0 %v238
  %306 = vmatprep.subr.bf16.mxu0 0
  %307 = vmatpush1.bf16.msra.mxu0 %v239
  %308 = vmatprep.subr.bf16.mxu0 0
  %309 = vmatpush1.bf16.msra.mxu0 %v240
  %310 = vmatprep.subr.bf16.mxu0 0
  %311 = vmatpush1.bf16.msra.mxu0 %v241
  %312 = vmatprep.subr.bf16.mxu0 0
  %313 = vmatpush1.bf16.msra.mxu0 %v242
  %314 = vmatprep.subr.bf16.mxu0 0
  %315 = vmatpush1.bf16.msra.mxu0 %v243
  %316 = vmatprep.subr.bf16.mxu0 0
  %317 = vmatpush1.bf16.msra.mxu0 %v244
  %318 = vmatprep.subr.bf16.mxu0 0
  %319 = vmatpush1.bf16.msra.mxu0 %v245
  %320 = vmatprep.subr.bf16.mxu0 0
  %321 = vmatpush1.bf16.msra.mxu0 %v246
  %322 = vmatprep.subr.bf16.mxu0 0
  %323 = vmatpush1.bf16.msra.mxu0 %v247
  %324 = vmatprep.subr.bf16.mxu0 0
  %325 = vmatpush1.bf16.msra.mxu0 %v248
  %326 = vmatprep.subr.bf16.mxu0 0
  %327 = vmatpush1.bf16.msra.mxu0 %v249
  %328 = vmatprep.subr.bf16.mxu0 0
  %329 = vmatpush1.bf16.msra.mxu0 %v250
  %330 = vmatprep.subr.bf16.mxu0 0
  %331 = vmatpush1.bf16.msra.mxu0 %v251
  %332 = vmatprep.mubr.bf16.mxu0 %v101
  %333 = vmatmul.mubr.bf16.gmra.mrb[0].mxu0 %v100
  %v334 = vpop.f32.mrb[0].mxu0
  %v335 = vadd.f32 %v92, %v334
  %v336 = vpop.f32.mrb[0].mxu0
  %v337 = vpop.f32.mrb[0].mxu0
  %v338 = vpop.f32.mrb[0].mxu0
  %339 = vdwg.mxu0
  %340 = vmatprep.subr.bf16.mxu0 0
  %341 = vmatpush1.bf16.msra.mxu0 %v252
  %342 = vmatprep.subr.bf16.mxu0 0
  %343 = vmatpush1.bf16.msra.mxu0 %v253
  %344 = vmatprep.subr.bf16.mxu0 0
  %345 = vmatpush1.bf16.msra.mxu0 %v254
  %346 = vmatprep.subr.bf16.mxu0 0
  %347 = vmatpush1.bf16.msra.mxu0 %v255
  %348 = vmatprep.subr.bf16.mxu0 0
  %349 = vmatpush1.bf16.msra.mxu0 %v256
  %350 = vmatprep.subr.bf16.mxu0 0
  %351 = vmatpush1.bf16.msra.mxu0 %v257
  %352 = vmatprep.subr.bf16.mxu0 0
  %353 = vmatpush1.bf16.msra.mxu0 %v258
  %354 = vmatprep.subr.bf16.mxu0 0
  %355 = vmatpush1.bf16.msra.mxu0 %v259
  %356 = vmatprep.subr.bf16.mxu0 0
  %357 = vmatpush1.bf16.msra.mxu0 %v260
  %358 = vmatprep.subr.bf16.mxu0 0
  %359 = vmatpush1.bf16.msra.mxu0 %v261
  %360 = vmatprep.subr.bf16.mxu0 0
  %361 = vmatpush1.bf16.msra.mxu0 %v262
  %362 = vmatprep.subr.bf16.mxu0 0
  %363 = vmatpush1.bf16.msra.mxu0 %v263
  %364 = vmatprep.subr.bf16.mxu0 0
  %365 = vmatpush1.bf16.msra.mxu0 %v264
  %366 = vmatprep.subr.bf16.mxu0 0
  %367 = vmatpush1.bf16.msra.mxu0 %v265
  %368 = vmatprep.subr.bf16.mxu0 0
  %369 = vmatpush1.bf16.msra.mxu0 %v266
  %370 = vmatprep.subr.bf16.mxu0 0
  %371 = vmatpush1.bf16.msra.mxu0 %v267
  %372 = vmatprep.mubr.bf16.mxu0 %v103
  %373 = vmatmul.mubr.bf16.gmra.mrb[0].mxu0 %v102
  %v374 = vpop.f32.mrb[0].mxu0
  %v375 = vadd.f32 %v335, %v374
  %v376 = vpop.f32.mrb[0].mxu0
  %v377 = vpop.f32.mrb[0].mxu0
  %v378 = vpop.f32.mrb[0].mxu0
  %379 = vdwg.mxu0
  %vm380 = vcmp.ge.f32.partialorder %v375, 0.0
  %v381 = vmul.f32 %v375, 0.2
  %v382 = vsel %vm380, %v375, %v381
  %v383 = vpack.c.bf16 %v382, %v382
  %v384 = vld [vmem:[%s3] sm:$0xf]
  %v385 = vld [vmem:[%s3 + $0x4] sm:$0xf]
  %v386 = vld [vmem:[%s3 + $0x8] sm:$0xf]
  %v387 = vld [vmem:[%s3 + $0xc] sm:$0xf]
  %v388 = vld [vmem:[%s3 + $0x10] sm:$0xf]
  %v389 = vld [vmem:[%s3 + $0x14] sm:$0xf]
  %v390 = vld [vmem:[%s3 + $0x18] sm:$0xf]
  %v391 = vld [vmem:[%s3 + $0x1c] sm:$0xf]
  %v392 = vld [vmem:[%s3 + $0x20] sm:$0xf]
  %v393 = vld [vmem:[%s3 + $0x24] sm:$0xf]
  %v394 = vld [vmem:[%s3 + $0x28] sm:$0xf]
  %v395 = vld [vmem:[%s3 + $0x2c] sm:$0xf]
  %v396 = vld [vmem:[%s3 + $0x30] sm:$0xf]
  %v397 = vld [vmem:[%s3 + $0x34] sm:$0xf]
  %v398 = vld [vmem:[%s3 + $0x38] sm:$0xf]
  %v399 = vld [vmem:[%s3 + $0x3c] sm:$0xf]
  %v400 = vld [vmem:[%s4] sm:$0x1]
  %v402 = vlaneseq
  %v403 = vshrl.u32 %v402, 7
  %v404 = vsub.s32 0, %v403
  %v405 = vrot.slane %v400, %v404
  %v423 = vunpack.c.l.b16 %v384
  %v424 = vunpack.c.l.b16 %v385
  %v425 = vunpack.c.l.b16 %v386
  %v426 = vunpack.c.l.b16 %v387
  %v427 = vunpack.c.l.b16 %v388
  %v428 = vunpack.c.l.b16 %v389
  %v429 = vunpack.c.l.b16 %v390
  %v430 = vunpack.c.l.b16 %v391
  %v431 = vunpack.c.l.b16 %v392
  %v432 = vunpack.c.l.b16 %v393
  %v433 = vunpack.c.l.b16 %v394
  %v434 = vunpack.c.l.b16 %v395
  %v435 = vunpack.c.l.b16 %v396
  %v436 = vunpack.c.l.b16 %v397
  %v437 = vunpack.c.l.b16 %v398
  %v438 = vunpack.c.l.b16 %v399
  %v439 = vpack.c.b16 %v424, %v423
  %v440 = vpack.c.b16 %v426, %v425
  %v441 = vpack.c.b16 %v428, %v427
  %v442 = vpack.c.b16 %v430, %v429
  %v443 = vpack.c.b16 %v432, %v431
  %v444 = vpack.c.b16 %v434, %v433
  %v445 = vpack.c.b16 %v436, %v435
  %v446 = vpack.c.b16 %v438, %v437
  %455 = vmatprep.subr.bf16.mxu0 0
  %456 = vmatpush1.bf16.msra.mxu0 %v439
  %457 = vmatprep.subr.bf16.mxu0 0
  %458 = vmatpush1.bf16.msra.mxu0 %v440
  %459 = vmatprep.subr.bf16.mxu0 0
  %460 = vmatpush1.bf16.msra.mxu0 %v441
  %461 = vmatprep.subr.bf16.mxu0 0
  %462 = vmatpush1.bf16.msra.mxu0 %v442
  %463 = vmatprep.subr.bf16.mxu0 0
  %464 = vmatpush1.bf16.msra.mxu0 %v443
  %465 = vmatprep.subr.bf16.mxu0 0
  %466 = vmatpush1.bf16.msra.mxu0 %v444
  %467 = vmatprep.subr.bf16.mxu0 0
  %468 = vmatpush1.bf16.msra.mxu0 %v445
  %469 = vmatprep.subr.bf16.mxu0 0
  %470 = vmatpush1.bf16.msra.mxu0 %v446
  %471 = vmatprep.subr.bf16.mxu0 0
  %472 = vmatpush1.bf16.msra.mxu0 0
  %473 = vmatprep.subr.bf16.mxu0 0
  %474 = vmatpush1.bf16.msra.mxu0 0
  %475 = vmatprep.subr.bf16.mxu0 0
  %476 = vmatpush1.bf16.msra.mxu0 0
  %477 = vmatprep.subr.bf16.mxu0 0
  %478 = vmatpush1.bf16.msra.mxu0 0
  %479 = vmatprep.subr.bf16.mxu0 0
  %480 = vmatpush1.bf16.msra.mxu0 0
  %481 = vmatprep.subr.bf16.mxu0 0
  %482 = vmatpush1.bf16.msra.mxu0 0
  %483 = vmatprep.subr.bf16.mxu0 0
  %484 = vmatpush1.bf16.msra.mxu0 0
  %485 = vmatprep.subr.bf16.mxu0 0
  %486 = vmatpush1.bf16.msra.mxu0 0
  %487 = vmatprep.mubr.bf16.mxu0 0
  %488 = vmatmul.mubr.bf16.gmra.mrb[0].mxu0 %v383
  %v489 = vpop.f32.mrb[0].mxu0
  %v490 = vadd.f32 %v405, %v489
  %v491 = vpop.f32.mrb[0].mxu0
  %v492 = vpop.f32.mrb[0].mxu0
  %v493 = vpop.f32.mrb[0].mxu0
  %494 = vdwg.mxu0
  %495 = vst [vmem:[%s5] sm:$0xff] %v490
  // Predicated region
  $region22: #{pg_discriminator_forward.5} parent=0 // pred_check
    _
  $region23: #{pg_discriminator_forward.5} parent=0 // pred_check_branch
    %497 = sbr.rel (0) target = $region25
  $region24: #{pg_discriminator_forward.5} parent=0 // pred_region
    _
  $region25: #{pg_discriminator_forward.5} parent=0 // pred_fallthru
    _
  // Predicated region
  $region26: #{pg_discriminator_forward.5} parent=0 // pred_check
    _
  $region27: #{pg_discriminator_forward.5} parent=0 // pred_check_branch
    %499 = sbr.rel (0) target = $region29
  $region28: #{pg_discriminator_forward.5} parent=0 // pred_region
    _
  $region29: #{pg_discriminator_forward.5} parent=0 // pred_fallthru
    _

</llo_original>
